<compile_context>
chip_gen: v7x
topology: tpu7x:2x2x1
jax: 0.10.0
libtpu: 0.0.40
codegen_flags: <defaults>
</compile_context>

<pallas_src>
import functools
import math

import jax
import jax.numpy as jnp
from jax.experimental import pallas as pl
from jax.experimental.pallas import tpu as pltpu


def _round_up(x, m):
    return (x + m - 1) // m * m


def bidecoder_kernel(ueT_ref, ieT_ref, psT_ref, out_ref, *, rating_vals, d_chunk):
    """Per-edge-tile bilinear decode (edges on lanes).

    ueT_ref : (D_pad, TE)      gathered user features (transposed), bf16
    ieT_ref : (D_pad, TE)      gathered item features (transposed), bf16
    psT_ref : (R*D_pad, D_pad) chunk-major stack of P_r^T, bf16 (constant)
    out_ref : (1, TE)          predicted rating per edge, f32 (lane-dense row)
    """
    R = len(rating_vals)
    dc = d_chunk
    n_chunks = psT_ref.shape[0] // (R * dc)

    ueT = ueT_ref[...]                                     # (D_pad, TE) bf16, MXU RHS

    # Chunk the bilinear contraction over the P output columns so the live
    # (R*dc, TE) f32 intermediate stays small (matters at production D).
    # n_chunks is a small, static trip count -> intentionally unrolled.
    sr = None
    for c in range(n_chunks):
        p_blk = psT_ref[pl.ds(c * R * dc, R * dc), :]      # (R*dc, D_pad) bf16
        # h[r*dc + j, e] = (u_e @ P_r)[c*dc + j]   -- bf16 MXU, f32 accumulate
        hb = jnp.dot(p_blk, ueT, preferred_element_type=jnp.float32)  # (R*dc, TE)
        hb = hb.reshape(R, dc, hb.shape[-1])               # (R, dc, TE)
        ie_blk = ieT_ref[pl.ds(c * dc, dc), :].astype(jnp.float32)    # (dc, TE)
        contrib = jnp.sum(hb * ie_blk[None], axis=1)       # (R, TE) f32
        sr = contrib if sr is None else sr + contrib

    # Fused softmax over the rating (sublane) axis + expected-rating sum with
    # static Python rating weights (no rv VMEM operand).
    m = jnp.max(sr, axis=0, keepdims=True)                 # (1, TE)
    e = jnp.exp(sr - m)                                    # (R, TE)
    denom = jnp.sum(e, axis=0, keepdims=True)              # (1, TE)
    numer = rating_vals[0] * e[0:1, :]
    for r in range(1, R):
        numer = numer + rating_vals[r] * e[r:r + 1, :]
    out_ref[...] = numer * pl.reciprocal(denom, approx=True)   # EUP vrcp


def bidecoder_forward(edge_u, edge_v, ufeat, ifeat, Ps, rating_vals,
                      *, te=512, d_chunk=256):
    """Wrapper: endpoint gather (glue), lane-dense edge tiling, decode."""
    R, D, _ = Ps.shape
    E = edge_u.shape[0]
    rating_vals = tuple(float(v) for v in rating_vals)

    # Pad the feature dim so in-kernel sublane-group reshapes are layout-free
    # (multiple of 8) and the chunked contraction divides evenly.
    dc = min(d_chunk, _round_up(D, 8))
    d_pad = _round_up(D, dc)
    n_tiles = pl.cdiv(E, te)
    e_pad = n_tiles * te

    # --- Operand prep (small / one-pass; no (E, D) transpose round trip) ----
    # Node tables: cast to bf16 (MXU-native, halves gather+DMA bytes), pad D,
    # transpose once (NU/NI x D work only, independent of E).
    ufT = jnp.pad(ufeat.astype(jnp.bfloat16), ((0, 0), (0, d_pad - D))).T   # (d_pad, NU)
    ifT = jnp.pad(ifeat.astype(jnp.bfloat16), ((0, 0), (0, d_pad - D))).T   # (d_pad, NI)

    # Fold edge padding into the index vectors, then gather columns directly
    # into the lanes-are-edges layout.
    pad = e_pad - E
    if pad:
        edge_u = jnp.concatenate([edge_u, jnp.zeros((pad,), edge_u.dtype)])
        edge_v = jnp.concatenate([edge_v, jnp.zeros((pad,), edge_v.dtype)])
    ueT = jnp.take(ufT, edge_u, axis=1)                    # (d_pad, e_pad) bf16
    ieT = jnp.take(ifT, edge_v, axis=1)                    # (d_pad, e_pad) bf16

    # Basis matrices: chunk-major stack of the transposed P_r so chunk c is a
    # contiguous (R*dc, d_pad) row block; bf16 MXU LHS.
    Ps_pad = jnp.pad(Ps, ((0, 0), (0, d_pad - D), (0, d_pad - D)))
    psT = (jnp.transpose(Ps_pad, (0, 2, 1))                # (R, j, i) = P_r^T
           .reshape(R, d_pad // dc, dc, d_pad)
           .transpose(1, 0, 2, 3)
           .reshape(R * d_pad, d_pad)
           .astype(jnp.bfloat16))

    kernel = functools.partial(bidecoder_kernel, rating_vals=rating_vals,
                               d_chunk=dc)

    cost = pl.CostEstimate(
        flops=2 * e_pad * R * d_pad * d_pad + 4 * e_pad * R * d_pad,
        transcendentals=e_pad * (R + 1),
        bytes_accessed=2 * 2 * d_pad * e_pad + 2 * R * d_pad * d_pad + 4 * e_pad,
    )
    # Explicit VMEM budget for the larger edge tiles; capped below v7x's
    # 64 MiB physical VMEM (v5e/v6e have 128 MiB, so the cap is safe there).
    vmem_need = (2 * 2 * d_pad * te * 2          # ueT/ieT tiles, double-buffered bf16
                 + 2 * R * d_pad * d_pad * 2     # stacked P (<= 2 buffers)
                 + 2 * te * 4                    # output rows, double-buffered f32
                 + 2 * R * dc * te * 4)          # chunk intermediates headroom
    vmem_limit = int(min(max(2 * vmem_need, 32 * 2 ** 20), 64 * 2 ** 20))

    def call(single_buffer_consts):
        if single_buffer_consts:
            # Constant operand: one resident VMEM buffer is enough; frees
            # R*D*D bytes for bigger edge tiles (matters most on v7x).
            ps_spec = pl.BlockSpec((R * d_pad, d_pad), lambda i: (0, 0),
                                   pipeline_mode=pl.Buffered(1))
        else:
            ps_spec = pl.BlockSpec((R * d_pad, d_pad), lambda i: (0, 0))
        return pl.pallas_call(
            kernel,
            out_shape=jax.ShapeDtypeStruct((1, e_pad), jnp.float32),
            grid_spec=pltpu.PrefetchScalarGridSpec(
                num_scalar_prefetch=0,
                grid=(n_tiles,),
                in_specs=[
                    pl.BlockSpec((d_pad, te), lambda i: (0, i)),   # user feats tile
                    pl.BlockSpec((d_pad, te), lambda i: (0, i)),   # item feats tile
                    ps_spec,                                       # stacked P_r^T
                ],
                out_specs=pl.BlockSpec((1, te), lambda i: (0, i)), # lane-dense row
            ),
            compiler_params=pltpu.CompilerParams(
                dimension_semantics=("parallel",),   # edge tiles shard across TCs
                vmem_limit_bytes=vmem_limit),
            cost_estimate=cost,
        )(ueT, ieT, psT)

    try:
        out = call(single_buffer_consts=True)
    except Exception:
        # Fallback if pl.Buffered(1) is unsupported in this build: default
        # double-buffered constant (identical results, slightly more VMEM).
        out = call(single_buffer_consts=False)
    return out[0, :E]                                       # (E,)


def _reference(edge_u, edge_v, ufeat, ifeat, Ps, rating_vals):
    """Plain-JAX reference mirroring the PyTorch forward."""
    cols = []
    for r in range(Ps.shape[0]):
        hu = ufeat @ Ps[r]                                  # torch.mm(ufeat, Ps[i])
        sr = jnp.sum(hu[edge_u] * ifeat[edge_v], axis=-1)   # u_dot_v per edge
        cols.append(sr[:, None])
    out = jax.nn.softmax(jnp.concatenate(cols, axis=1), axis=1)
    rv = jnp.asarray(rating_vals, dtype=jnp.float32)
    return jnp.sum(out * rv[None, :], axis=1)


if __name__ == "__main__":
    rating_vals = [1.0, 2.0, 3.0, 4.0, 5.0]   # R = 5
    D = 32          # in_dim
    NU = 24         # number of user nodes
    NI = 20         # number of item nodes
    E = 1000        # edges (pads to 1024 -> 2 tiles of 512, keeps both v7x TCs busy)

    key = jax.random.PRNGKey(0)
    k_u, k_i, k_p, k_eu, k_ev = jax.random.split(key, 5)

    ufeat = jax.random.normal(k_u, (NU, D), dtype=jnp.float32)
    ifeat = jax.random.normal(k_i, (NI, D), dtype=jnp.float32)

    # Xavier-uniform init per P_r (matches torch.nn.init.xavier_uniform_).
    bound = math.sqrt(6.0 / (D + D))
    Ps = jax.random.uniform(k_p, (len(rating_vals), D, D), dtype=jnp.float32,
                            minval=-bound, maxval=bound)

    # The kernel feeds the MXU bf16 operands (perf review).  Quantize the test
    # inputs to bf16-representable values so the f32 reference measures kernel
    # error (pipelining / approx reciprocal), not input-rounding error.
    q = lambda a: a.astype(jnp.bfloat16).astype(jnp.float32)
    ufeat, ifeat, Ps = q(ufeat), q(ifeat), q(Ps)

    # Synthetic user->item edge list ("flattened" bipartite graph).
    edge_u = jax.random.randint(k_eu, (E,), 0, NU, dtype=jnp.int32)
    edge_v = jax.random.randint(k_ev, (E,), 0, NI, dtype=jnp.int32)

    ratings = bidecoder_forward(edge_u, edge_v, ufeat, ifeat, Ps, rating_vals)
    ratings = jax.block_until_ready(ratings)

    ref = _reference(edge_u, edge_v, ufeat, ifeat, Ps, rating_vals)
    assert ratings.shape == (E,)
    err = jnp.max(jnp.abs(ratings - ref))
    # Tolerance covers the EUP approx-reciprocal (<= ~1e-2 rel worst case);
    # the bf16 MXU operands are exact on the bf16-quantized test inputs.
    assert jnp.allclose(ratings, ref, atol=2e-2, rtol=1e-2), float(err)

    print("KERNEL_OK")
</pallas_src>

<mosaic_0001>
module attributes {stable_mosaic.version = 11 : i64} {
  func.func @bidecoder_kernel(%arg0: i32, %arg1: memref<32x512xbf16, #tpu.memory_space<vmem>>, %arg2: memref<32x512xbf16, #tpu.memory_space<vmem>>, %arg3: memref<160x32xbf16, #tpu.memory_space<vmem>>, %arg4: memref<1x512xf32, #tpu.memory_space<vmem>>) attributes {dimension_semantics = [#tpu.dimension_semantics<parallel>], iteration_bounds = array<i64: 2>, scalar_prefetch = 0 : i64, scratch_operands = 0 : i64, tpu.core_type = #tpu.core_type<tc>, window_params = [{transform_indices = @transform_0, window_bounds = array<i64: 32, 512>}, {transform_indices = @transform_1, window_bounds = array<i64: 32, 512>}, {pipeline_mode = #tpu.pipeline_mode<synchronous>, transform_indices = @transform_2, window_bounds = array<i64: 160, 32>}, {transform_indices = @transform_3, window_bounds = array<i64: 1, 512>}]} {
    %c0 = arith.constant 0 : index
    %c0_0 = arith.constant 0 : index
    %0 = vector.load %arg1[%c0, %c0_0] : memref<32x512xbf16, #tpu.memory_space<vmem>>, vector<32x512xbf16>
    %c0_1 = arith.constant 0 : index
    %c0_2 = arith.constant 0 : index
    %1 = vector.load %arg3[%c0_1, %c0_2] : memref<160x32xbf16, #tpu.memory_space<vmem>>, vector<160x32xbf16>
    %cst = arith.constant dense<0.000000e+00> : vector<160x512xf32>
    %2 = tpu.matmul %1, %0, %cst {dimension_numbers = #tpu.dot_dimension_numbers<[1], [0], [0], [1], [0, 0, 1, 1], [], []>} : vector<160x32xbf16>, vector<32x512xbf16>, vector<160x512xf32> -> vector<160x512xf32>
    %3 = vector.shape_cast %2 : vector<160x512xf32> to vector<5x32x512xf32>
    %c0_3 = arith.constant 0 : index
    %c0_4 = arith.constant 0 : index
    %4 = vector.load %arg2[%c0_3, %c0_4] : memref<32x512xbf16, #tpu.memory_space<vmem>>, vector<32x512xbf16>
    %5 = arith.extf %4 : vector<32x512xbf16> to vector<32x512xf32>
    %6 = vector.shape_cast %5 : vector<32x512xf32> to vector<1x32x512xf32>
    %7 = vector.broadcast %6 : vector<1x32x512xf32> to vector<5x32x512xf32>
    %8 = arith.mulf %3, %7 : vector<5x32x512xf32>
    %cst_5 = arith.constant dense<0.000000e+00> : vector<5x512xf32>
    %9 = vector.multi_reduction <add>, %8, %cst_5 [1] : vector<5x32x512xf32> to vector<5x512xf32>
    %cst_6 = arith.constant dense<0xFF800000> : vector<512xf32>
    %10 = vector.multi_reduction <maximumf>, %9, %cst_6 [0] : vector<5x512xf32> to vector<512xf32>
    %11 = vector.shape_cast %10 : vector<512xf32> to vector<1x512xf32>
    %12 = vector.broadcast %11 : vector<1x512xf32> to vector<5x512xf32>
    %13 = arith.subf %9, %12 : vector<5x512xf32>
    %14 = math.exp %13 : vector<5x512xf32>
    %cst_7 = arith.constant dense<0.000000e+00> : vector<512xf32>
    %15 = vector.multi_reduction <add>, %14, %cst_7 [0] : vector<5x512xf32> to vector<512xf32>
    %16 = vector.shape_cast %15 : vector<512xf32> to vector<1x512xf32>
    %17 = vector.extract_strided_slice %14 {offsets = [0, 0], sizes = [1, 512], strides = [1, 1]} : vector<5x512xf32> to vector<1x512xf32>
    %cst_8 = arith.constant 1.000000e+00 : f32
    %18 = vector.broadcast %cst_8 : f32 to vector<1x512xf32>
    %19 = arith.mulf %18, %17 : vector<1x512xf32>
    %20 = vector.extract_strided_slice %14 {offsets = [1, 0], sizes = [1, 512], strides = [1, 1]} : vector<5x512xf32> to vector<1x512xf32>
    %cst_9 = arith.constant 2.000000e+00 : f32
    %21 = vector.broadcast %cst_9 : f32 to vector<1x512xf32>
    %22 = arith.mulf %21, %20 : vector<1x512xf32>
    %23 = arith.addf %19, %22 : vector<1x512xf32>
    %24 = vector.extract_strided_slice %14 {offsets = [2, 0], sizes = [1, 512], strides = [1, 1]} : vector<5x512xf32> to vector<1x512xf32>
    %cst_10 = arith.constant 3.000000e+00 : f32
    %25 = vector.broadcast %cst_10 : f32 to vector<1x512xf32>
    %26 = arith.mulf %25, %24 : vector<1x512xf32>
    %27 = arith.addf %23, %26 : vector<1x512xf32>
    %28 = vector.extract_strided_slice %14 {offsets = [3, 0], sizes = [1, 512], strides = [1, 1]} : vector<5x512xf32> to vector<1x512xf32>
    %cst_11 = arith.constant 4.000000e+00 : f32
    %29 = vector.broadcast %cst_11 : f32 to vector<1x512xf32>
    %30 = arith.mulf %29, %28 : vector<1x512xf32>
    %31 = arith.addf %27, %30 : vector<1x512xf32>
    %32 = vector.extract_strided_slice %14 {offsets = [4, 0], sizes = [1, 512], strides = [1, 1]} : vector<5x512xf32> to vector<1x512xf32>
    %cst_12 = arith.constant 5.000000e+00 : f32
    %33 = vector.broadcast %cst_12 : f32 to vector<1x512xf32>
    %34 = arith.mulf %33, %32 : vector<1x512xf32>
    %35 = arith.addf %31, %34 : vector<1x512xf32>
    %36 = tpu.reciprocal %16 {approx = true} : vector<1x512xf32> -> vector<1x512xf32>
    %37 = arith.mulf %35, %36 : vector<1x512xf32>
    %c0_13 = arith.constant 0 : index
    %c0_14 = arith.constant 0 : index
    %38 = vector.load %arg4[%c0_13, %c0_14] : memref<1x512xf32, #tpu.memory_space<vmem>>, vector<1x512xf32>
    tpu.vector_store %arg4[%c0_13, %c0_14], %37 {strides = array<i32>} : memref<1x512xf32, #tpu.memory_space<vmem>>, vector<1x512xf32>,
    return
  }
  func.func @transform_0(%arg0: i32) -> (i32, i32) {
    %c0_i32 = arith.constant 0 : i32
    %c0_i32_0 = arith.constant 0 : i32
    return %c0_i32, %arg0 : i32, i32
  }
  func.func @transform_1(%arg0: i32) -> (i32, i32) {
    %c0_i32 = arith.constant 0 : i32
    %c0_i32_0 = arith.constant 0 : i32
    return %c0_i32, %arg0 : i32, i32
  }
  func.func @transform_2(%arg0: i32) -> (i32, i32) {
    %c0_i32 = arith.constant 0 : i32
    %c0_i32_0 = arith.constant 0 : i32
    %c0_i32_1 = arith.constant 0 : i32
    return %c0_i32, %c0_i32_0 : i32, i32
  }
  func.func @transform_3(%arg0: i32) -> (i32, i32) {
    %c0_i32 = arith.constant 0 : i32
    %c0_i32_0 = arith.constant 0 : i32
    return %c0_i32, %arg0 : i32, i32
  }
}

module attributes {stable_mosaic.version = 11 : i64} {
  func.func @bidecoder_kernel(%arg0: i32, %arg1: memref<32x512xbf16, #tpu.memory_space<vmem>>, %arg2: memref<32x512xbf16, #tpu.memory_space<vmem>>, %arg3: memref<160x32xbf16, #tpu.memory_space<vmem>>, %arg4: memref<1x512xf32, #tpu.memory_space<vmem>>) attributes {dimension_semantics = [#tpu.dimension_semantics<parallel>], iteration_bounds = array<i64: 2>, scalar_prefetch = 0 : i64, scratch_operands = 0 : i64, tpu.core_type = #tpu.core_type<tc>, window_params = [{transform_indices = @transform_0, window_bounds = array<i64: 32, 512>}, {transform_indices = @transform_1, window_bounds = array<i64: 32, 512>}, {pipeline_mode = #tpu.pipeline_mode<synchronous>, transform_indices = @transform_2, window_bounds = array<i64: 160, 32>}, {transform_indices = @transform_3, window_bounds = array<i64: 1, 512>}]} {
    %c0 = arith.constant 0 : index
    %c0_0 = arith.constant 0 : index
    %0 = vector.load %arg1[%c0, %c0_0] : memref<32x512xbf16, #tpu.memory_space<vmem>>, vector<32x512xbf16>
    %c0_1 = arith.constant 0 : index
    %c0_2 = arith.constant 0 : index
    %1 = vector.load %arg3[%c0_1, %c0_2] : memref<160x32xbf16, #tpu.memory_space<vmem>>, vector<160x32xbf16>
    %cst = arith.constant dense<0.000000e+00> : vector<160x512xf32>
    %2 = tpu.matmul %1, %0, %cst {dimension_numbers = #tpu.dot_dimension_numbers<[1], [0], [0], [1], [0, 0, 1, 1], [], []>} : vector<160x32xbf16>, vector<32x512xbf16>, vector<160x512xf32> -> vector<160x512xf32>
    %3 = vector.shape_cast %2 : vector<160x512xf32> to vector<5x32x512xf32>
    %c0_3 = arith.constant 0 : index
    %c0_4 = arith.constant 0 : index
    %4 = vector.load %arg2[%c0_3, %c0_4] : memref<32x512xbf16, #tpu.memory_space<vmem>>, vector<32x512xbf16>
    %5 = arith.extf %4 : vector<32x512xbf16> to vector<32x512xf32>
    %6 = vector.shape_cast %5 : vector<32x512xf32> to vector<1x32x512xf32>
    %7 = vector.broadcast %6 : vector<1x32x512xf32> to vector<5x32x512xf32>
    %8 = arith.mulf %3, %7 : vector<5x32x512xf32>
    %cst_5 = arith.constant dense<0.000000e+00> : vector<5x512xf32>
    %9 = vector.multi_reduction <add>, %8, %cst_5 [1] : vector<5x32x512xf32> to vector<5x512xf32>
    %cst_6 = arith.constant dense<0xFF800000> : vector<512xf32>
    %10 = vector.multi_reduction <maximumf>, %9, %cst_6 [0] : vector<5x512xf32> to vector<512xf32>
    %11 = vector.shape_cast %10 : vector<512xf32> to vector<1x512xf32>
    %12 = vector.broadcast %11 : vector<1x512xf32> to vector<5x512xf32>
    %13 = arith.subf %9, %12 : vector<5x512xf32>
    %14 = math.exp %13 : vector<5x512xf32>
    %cst_7 = arith.constant dense<0.000000e+00> : vector<512xf32>
    %15 = vector.multi_reduction <add>, %14, %cst_7 [0] : vector<5x512xf32> to vector<512xf32>
    %16 = vector.shape_cast %15 : vector<512xf32> to vector<1x512xf32>
    %17 = vector.extract_strided_slice %14 {offsets = [0, 0], sizes = [1, 512], strides = [1, 1]} : vector<5x512xf32> to vector<1x512xf32>
    %cst_8 = arith.constant 1.000000e+00 : f32
    %18 = vector.broadcast %cst_8 : f32 to vector<1x512xf32>
    %19 = arith.mulf %18, %17 : vector<1x512xf32>
    %20 = vector.extract_strided_slice %14 {offsets = [1, 0], sizes = [1, 512], strides = [1, 1]} : vector<5x512xf32> to vector<1x512xf32>
    %cst_9 = arith.constant 2.000000e+00 : f32
    %21 = vector.broadcast %cst_9 : f32 to vector<1x512xf32>
    %22 = arith.mulf %21, %20 : vector<1x512xf32>
    %23 = arith.addf %19, %22 : vector<1x512xf32>
    %24 = vector.extract_strided_slice %14 {offsets = [2, 0], sizes = [1, 512], strides = [1, 1]} : vector<5x512xf32> to vector<1x512xf32>
    %cst_10 = arith.constant 3.000000e+00 : f32
    %25 = vector.broadcast %cst_10 : f32 to vector<1x512xf32>
    %26 = arith.mulf %25, %24 : vector<1x512xf32>
    %27 = arith.addf %23, %26 : vector<1x512xf32>
    %28 = vector.extract_strided_slice %14 {offsets = [3, 0], sizes = [1, 512], strides = [1, 1]} : vector<5x512xf32> to vector<1x512xf32>
    %cst_11 = arith.constant 4.000000e+00 : f32
    %29 = vector.broadcast %cst_11 : f32 to vector<1x512xf32>
    %30 = arith.mulf %29, %28 : vector<1x512xf32>
    %31 = arith.addf %27, %30 : vector<1x512xf32>
    %32 = vector.extract_strided_slice %14 {offsets = [4, 0], sizes = [1, 512], strides = [1, 1]} : vector<5x512xf32> to vector<1x512xf32>
    %cst_12 = arith.constant 5.000000e+00 : f32
    %33 = vector.broadcast %cst_12 : f32 to vector<1x512xf32>
    %34 = arith.mulf %33, %32 : vector<1x512xf32>
    %35 = arith.addf %31, %34 : vector<1x512xf32>
    %36 = tpu.reciprocal %16 {approx = true} : vector<1x512xf32> -> vector<1x512xf32>
    %37 = arith.mulf %35, %36 : vector<1x512xf32>
    %c0_13 = arith.constant 0 : index
    %c0_14 = arith.constant 0 : index
    %38 = vector.load %arg4[%c0_13, %c0_14] : memref<1x512xf32, #tpu.memory_space<vmem>>, vector<1x512xf32>
    tpu.vector_store %arg4[%c0_13, %c0_14], %37 {strides = array<i32>} : memref<1x512xf32, #tpu.memory_space<vmem>>, vector<1x512xf32>,
    return
  }
  func.func @transform_0(%arg0: i32) -> (i32, i32) {
    %c0_i32 = arith.constant 0 : i32
    %c0_i32_0 = arith.constant 0 : i32
    return %c0_i32, %arg0 : i32, i32
  }
  func.func @transform_1(%arg0: i32) -> (i32, i32) {
    %c0_i32 = arith.constant 0 : i32
    %c0_i32_0 = arith.constant 0 : i32
    return %c0_i32, %arg0 : i32, i32
  }
  func.func @transform_2(%arg0: i32) -> (i32, i32) {
    %c0_i32 = arith.constant 0 : i32
    %c0_i32_0 = arith.constant 0 : i32
    %c0_i32_1 = arith.constant 0 : i32
    return %c0_i32, %c0_i32_0 : i32, i32
  }
  func.func @transform_3(%arg0: i32) -> (i32, i32) {
    %c0_i32 = arith.constant 0 : i32
    %c0_i32_0 = arith.constant 0 : i32
    return %c0_i32, %arg0 : i32, i32
  }
}

</mosaic_0001>

<llo_original>
// kernel: tpu_custom_call.1
$region0: #{tpu_custom_call.1}
  #allocation0 [shape = 'u32[]', space=smem, size = 0x4, offset = 0x4, fixed_abs, tag = 'smem constant byte address 0x4 - core index']
  #allocation1 [shape = 'u32[144,128]{1,0:T(1,128)}', space=vmem, size = 0x12000, scoped, tag = 'internal scratch']
  %s0 = inlined_call_operand.hbm [shape: bf16[32,1024], index: 0, kind: input, shape index: {}]
  %s1 = inlined_call_operand.hbm [shape: bf16[32,1024], index: 1, kind: input, shape index: {}]
  %s2 = inlined_call_operand.vmem [shape: bf16[160,32], index: 2, kind: input, shape index: {}]
  %s3 = inlined_call_operand.hbm [shape: f32[1,1024], index: 3, kind: output, shape index: {}]
  %s4 = sld [smem:[#allocation0]]
  $region53: #{tpu_custom_call.1} parent=0
    _
  %s6 = ssub.s32 1, %s4
  %s7 = scalar_select 0, %s6, %s4
  $region1: #{tpu_custom_call.1} parent=0
    #allocation2 [shape = 'u8[65536]{0}', space=vmem, size = 0x10000, scoped, tag = 'input window, operand 0']
    #allocation3 [shape = 's32[2]{0}', space=sflag, size = 0x8, scoped, tag = 'scoped memory for tpu_custom_call.1']
    #allocation4 [shape = 's32[2]{0}', space=sflag, size = 0x8, scoped, tag = 'scoped memory for tpu_custom_call.1']
    #allocation5 [shape = 'u8[65536]{0}', space=vmem, size = 0x10000, scoped, tag = 'input window, operand 1']
    #allocation6 [shape = 's32[2]{0}', space=sflag, size = 0x8, scoped, tag = 'scoped memory for tpu_custom_call.1']
    #allocation7 [shape = 'u8[4096]{0}', space=vmem, size = 0x1000, scoped, tag = 'output window, operand 0']
    %8 = vsyncpa [#allocation3], 0
    %s9 = scalar_lea.sflag [#allocation3], 1
    %10 = vsyncpa %s9, 0
    %11 = vsyncpa [#allocation6], 0
    %s12 = scalar_lea.sflag [#allocation6], 1
    %13 = vsyncpa %s12, 0
    %14 = vsyncpa [#allocation4], 0
    %s15 = scalar_lea.sflag [#allocation4], 1
    %16 = vsyncpa %s15, 0
    loop: start=0, step=1, limit=4
    $region2: #{tpu_custom_call.1} parent=1 // loop_pre_header
      _
    $region3: #{tpu_custom_call.1} parent=1 // loop_header
      %s18 = sphi 0, %s22
      %p19 = scmp.ge.s32.totalorder %s18, 4
      %s28 = sphi 0, %s30
      %s31 = sphi 0, %s28
      %s32 = sphi 0, %s31
      %s48 = sphi 0, %s32
      %s54 = sphi 0, %s56
      %s57 = sphi 0, %s54
      %s58 = sphi 0, %s57
      %s74 = sphi 0, %s58
      %s78 = sphi 0, %s78
      %s80 = sphi 0, %s78
      %s81 = sphi 0, %s80
      %s95 = sphi 0, %s81
      %s101 = sphi 0, %s103
      %s104 = sphi 0, %s101
      %s105 = sphi 0, %s104
      %s121 = sphi 0, %s105
    $region4: #{tpu_custom_call.1} parent=1 // loop_header_branch
      %21 = sbr.rel (%p19) target = $region8
    $region5: #{tpu_custom_call.1} parent=1 // loop_body
      %s23 = ssub.s32 %s18, 1
      %s24 = ssub.s32 %s18, 2
      %s25 = sadd.s32 %s18, 1
      %s26 = ssub.s32 %s18, %s25
      %p27 = scmp.eq.s32.totalorder %s26, 0
      %s29 = sadd.s32 %s28, 1
      %s30 = scalar_select %p27, %s28, %s29
      %p33 = pneg %p27
      %p34 = scmp.eq.s32.totalorder %s18, 1
      %p35 = por %p33, %p34
      %p36 = scmp.ne.s32.totalorder %s28, %s31
      %p37 = scmp.eq.s32.totalorder %s18, 0
      %p38 = por %p36, %p37
      %p39 = scmp.ne.s32.totalorder %s28, %s31
      %p40 = scmp.eq.s32.totalorder %s23, 1
      %p41 = por %p39, %p40
      %p42 = scmp.ne.s32.totalorder %s31, %s32
      %p43 = scmp.eq.s32.totalorder %s23, 0
      %p44 = por %p42, %p43
      %p45 = scmp.ne.s32.totalorder %s31, %s32
      %p46 = scmp.eq.s32.totalorder %s24, 1
      %p47 = por %p45, %p46
      %p49 = scmp.ne.s32.totalorder %s32, %s48
      %p50 = scmp.eq.s32.totalorder %s24, 0
      %p51 = por %p49, %p50
      %s52 = ssub.s32 %s18, %s25
      %p53 = scmp.eq.s32.totalorder %s52, 0
      %s55 = sadd.s32 %s54, 1
      %s56 = scalar_select %p53, %s54, %s55
      %p59 = pneg %p53
      %p60 = scmp.eq.s32.totalorder %s18, 1
      %p61 = por %p59, %p60
      %p62 = scmp.ne.s32.totalorder %s54, %s57
      %p63 = scmp.eq.s32.totalorder %s18, 0
      %p64 = por %p62, %p63
      %p65 = scmp.ne.s32.totalorder %s54, %s57
      %p66 = scmp.eq.s32.totalorder %s23, 1
      %p67 = por %p65, %p66
      %p68 = scmp.ne.s32.totalorder %s57, %s58
      %p69 = scmp.eq.s32.totalorder %s23, 0
      %p70 = por %p68, %p69
      %p71 = scmp.ne.s32.totalorder %s57, %s58
      %p72 = scmp.eq.s32.totalorder %s24, 1
      %p73 = por %p71, %p72
      %p75 = scmp.ne.s32.totalorder %s58, %s74
      %p76 = scmp.eq.s32.totalorder %s24, 0
      %p77 = por %p75, %p76
      %s79 = sadd.s32 %s78, 1
      %p82 = scmp.eq.s32.totalorder %s18, 1
      %p83 = scmp.ne.s32.totalorder %s78, %s80
      %p84 = scmp.eq.s32.totalorder %s18, 0
      %p85 = por %p83, %p84
      %p86 = scmp.ne.s32.totalorder %s78, %s80
      %p87 = scmp.eq.s32.totalorder %s23, 1
      %p88 = por %p86, %p87
      %p89 = scmp.ne.s32.totalorder %s80, %s81
      %p90 = scmp.eq.s32.totalorder %s23, 0
      %p91 = por %p89, %p90
      %p92 = scmp.ne.s32.totalorder %s80, %s81
      %p93 = scmp.eq.s32.totalorder %s24, 1
      %p94 = por %p92, %p93
      %p96 = scmp.ne.s32.totalorder %s81, %s95
      %p97 = scmp.eq.s32.totalorder %s24, 0
      %p98 = por %p96, %p97
      %s99 = ssub.s32 %s18, %s25
      %p100 = scmp.eq.s32.totalorder %s99, 0
      %s102 = sadd.s32 %s101, 1
      %s103 = scalar_select %p100, %s101, %s102
      %p106 = pneg %p100
      %p107 = scmp.eq.s32.totalorder %s18, 1
      %p108 = por %p106, %p107
      %p109 = scmp.ne.s32.totalorder %s101, %s104
      %p110 = scmp.eq.s32.totalorder %s18, 0
      %p111 = por %p109, %p110
      %p112 = scmp.ne.s32.totalorder %s101, %s104
      %p113 = scmp.eq.s32.totalorder %s23, 1
      %p114 = por %p112, %p113
      %p115 = scmp.ne.s32.totalorder %s104, %s105
      %p116 = scmp.eq.s32.totalorder %s23, 0
      %p117 = por %p115, %p116
      %p118 = scmp.ne.s32.totalorder %s104, %s105
      %p119 = scmp.eq.s32.totalorder %s24, 1
      %p120 = por %p118, %p119
      %p122 = scmp.ne.s32.totalorder %s105, %s121
      %p123 = scmp.eq.s32.totalorder %s24, 0
      %p124 = por %p122, %p123
      %p125 = scmp.le.s32.totalorder 1, %s18
      %p126 = scmp.lt.s32.totalorder %s18, 3
      %p127 = pnand %p125, %p126
      %p128 = pneg %p127
      // Predicated region
      $region9: #{tpu_custom_call.1} parent=5 // pred_check
        _
      $region10: #{tpu_custom_call.1} parent=5 // pred_check_branch
        %130 = sbr.rel (%p127) target = $region12
      $region11: #{tpu_custom_call.1} parent=5 // pred_region
        %s131 = ssub.s32 %s18, 1
        // Predicated region
        $region13: #{tpu_custom_call.1} parent=11 // pred_check
          %p132 = pneg %p91
        $region14: #{tpu_custom_call.1} parent=11 // pred_check_branch
          %134 = sbr.rel (%p132) target = $region16
        $region15: #{tpu_custom_call.1} parent=11 // pred_region
          _
        $region16: #{tpu_custom_call.1} parent=11 // pred_fallthru
          _
      $region12: #{tpu_custom_call.1} parent=5 // pred_fallthru
        _
      %p135 = scmp.lt.s32.totalorder %s18, 2
      // Predicated region
      $region17: #{tpu_custom_call.1} parent=5 // pred_check
        %p136 = pneg %p135
      $region18: #{tpu_custom_call.1} parent=5 // pred_check_branch
        %138 = sbr.rel (%p136) target = $region20
      $region19: #{tpu_custom_call.1} parent=5 // pred_region
        // Predicated region
        $region21: #{tpu_custom_call.1} parent=19 // pred_check
          %p139 = pneg %p38
        $region22: #{tpu_custom_call.1} parent=19 // pred_check_branch
          %141 = sbr.rel (%p139) target = $region24
        $region23: #{tpu_custom_call.1} parent=19 // pred_region
          %s142 = sand.u32 %s28, 1
          %s143 = scalar_lea.sflag [#allocation3], %s142
          %s144 = sand.u32 %s28, 1
          %s145 = smul.addr %s144, 64
          %s146 = scalar_lea.vmem [#allocation2], %s145
          %s147 = smul.u32 4, %s18
          %s149 = ssub.s32 1024, 1024
          %150 = vsyncadd %s143, %s149
          %s151 = smul.addr %s147, 64
          %s152 = scalar_lea.hbm %s0, %s151
          %s153 = sshll.u32 %s146, 4
          %s154 = int_to_ptr.vmem [resolvable:$true] %s153
          %159 = dma.hbm_to_vmem [thread:$0]  %s152, 1024, %s154, %s143, 512, 256, 16
        $region24: #{tpu_custom_call.1} parent=19 // pred_fallthru
          _
        // Predicated region
        $region25: #{tpu_custom_call.1} parent=19 // pred_check
          %p160 = pneg %p64
        $region26: #{tpu_custom_call.1} parent=19 // pred_check_branch
          %162 = sbr.rel (%p160) target = $region28
        $region27: #{tpu_custom_call.1} parent=19 // pred_region
          %s163 = sand.u32 %s54, 1
          %s164 = scalar_lea.sflag [#allocation6], %s163
          %s165 = sand.u32 %s54, 1
          %s166 = smul.addr %s165, 64
          %s167 = scalar_lea.vmem [#allocation5], %s166
          %s168 = smul.u32 4, %s18
          %s170 = ssub.s32 1024, 1024
          %171 = vsyncadd %s164, %s170
          %s172 = smul.addr %s168, 64
          %s173 = scalar_lea.hbm %s1, %s172
          %s174 = sshll.u32 %s167, 4
          %s175 = int_to_ptr.vmem [resolvable:$true] %s174
          %180 = dma.hbm_to_vmem [thread:$0]  %s173, 1024, %s175, %s164, 512, 256, 16
        $region28: #{tpu_custom_call.1} parent=19 // pred_fallthru
          _
      $region20: #{tpu_custom_call.1} parent=5 // pred_fallthru
        _
      %p181 = scmp.le.s32.totalorder 1, %s18
      %p182 = scmp.lt.s32.totalorder %s18, 3
      %p183 = pnand %p181, %p182
      %p184 = pneg %p183
      // Predicated region
      $region29: #{tpu_custom_call.1} parent=5 // pred_check
        _
      $region30: #{tpu_custom_call.1} parent=5 // pred_check_branch
        %186 = sbr.rel (%p183) target = $region32
      $region31: #{tpu_custom_call.1} parent=5 // pred_region
        %s187 = ssub.s32 %s18, 1
        %s188 = sand.u32 %s31, 1
        %s189 = scalar_lea.sflag [#allocation3], %s188
        %s190 = sand.u32 %s31, 1
        %s191 = smul.addr %s190, 64
        %s192 = scalar_lea.vmem [#allocation2], %s191
        // Predicated region
        $region33: #{tpu_custom_call.1} parent=31 // pred_check
          %p193 = pneg %p44
        $region34: #{tpu_custom_call.1} parent=31 // pred_check_branch
          %195 = sbr.rel (%p193) target = $region36
        $region35: #{tpu_custom_call.1} parent=31 // pred_region
          %196 = dma.done %s189, 1024
        $region36: #{tpu_custom_call.1} parent=31 // pred_fallthru
          _
        %s197 = sand.u32 %s57, 1
        %s198 = scalar_lea.sflag [#allocation6], %s197
        %s199 = sand.u32 %s57, 1
        %s200 = smul.addr %s199, 64
        %s201 = scalar_lea.vmem [#allocation5], %s200
        // Predicated region
        $region37: #{tpu_custom_call.1} parent=31 // pred_check
          %p202 = pneg %p70
        $region38: #{tpu_custom_call.1} parent=31 // pred_check_branch
          %204 = sbr.rel (%p202) target = $region40
        $region39: #{tpu_custom_call.1} parent=31 // pred_region
          %205 = dma.done %s198, 1024
        $region40: #{tpu_custom_call.1} parent=31 // pred_fallthru
          _
        %s206 = sand.u32 %s31, 1
        %s207 = scalar_lea.sflag [#allocation3], %s206
        %s208 = sand.u32 %s31, 1
        %s209 = smul.addr %s208, 64
        %s210 = scalar_lea.vmem [#allocation2], %s209
        %p211 = pneg %p44
        %p212 = pneg %p41
        %s213 = sand.u32 %s57, 1
        %s214 = scalar_lea.sflag [#allocation6], %s213
        %s215 = sand.u32 %s57, 1
        %s216 = smul.addr %s215, 64
        %s217 = scalar_lea.vmem [#allocation5], %s216
        %p218 = pneg %p70
        %p219 = pneg %p67
        %p220 = pneg %p91
        %p221 = pneg %p88
        %p222 = pneg %p117
        %p223 = pneg %p114
        %s224 = sand.u32 %s104, 1
        %s225 = scalar_lea.sflag [#allocation4], %s224
        %s226 = sand.u32 %s104, 1
        %s227 = smul.addr %s226, 4
        %s228 = scalar_lea.vmem [#allocation7], %s227
        %s229 = smul.u32 4, %s23
        %s230 = smul.u32 4, %s23
        %s231 = smul.u32 4, %s23
        %v233 = vld [vmem:[%s192] sm:$0xff]
        %v234 = vld [vmem:[%s192 + $0x8] sm:$0xff]
        %v235 = vld [vmem:[%s192 + $0x10] sm:$0xff]
        %v236 = vld [vmem:[%s192 + $0x18] sm:$0xff]
        %v237 = vld [vmem:[%s192 + $0x20] sm:$0xff]
        %v238 = vld [vmem:[%s192 + $0x28] sm:$0xff]
        %v239 = vld [vmem:[%s192 + $0x30] sm:$0xff]
        %v240 = vld [vmem:[%s192 + $0x38] sm:$0xff]
        %v241 = vld [vmem:[%s2] sm:$0xf]
        %v242 = vld [vmem:[%s2 + $0x4] sm:$0xf]
        %v243 = vld [vmem:[%s2 + $0x8] sm:$0xf]
        %v244 = vld [vmem:[%s2 + $0xc] sm:$0xf]
        %v245 = vld [vmem:[%s2 + $0x10] sm:$0xf]
        %v246 = vld [vmem:[%s2 + $0x14] sm:$0xf]
        %v247 = vld [vmem:[%s2 + $0x18] sm:$0xf]
        %v248 = vld [vmem:[%s2 + $0x1c] sm:$0xf]
        %v249 = vld [vmem:[%s2 + $0x20] sm:$0xf]
        %v250 = vld [vmem:[%s2 + $0x24] sm:$0xf]
        %v251 = vld [vmem:[%s2 + $0x28] sm:$0xf]
        %v252 = vld [vmem:[%s2 + $0x2c] sm:$0xf]
        %v253 = vld [vmem:[%s2 + $0x30] sm:$0xf]
        %v254 = vld [vmem:[%s2 + $0x34] sm:$0xf]
        %v255 = vld [vmem:[%s2 + $0x38] sm:$0xf]
        %v256 = vld [vmem:[%s2 + $0x3c] sm:$0xf]
        %v257 = vld [vmem:[%s2 + $0x40] sm:$0xf]
        %v258 = vld [vmem:[%s2 + $0x44] sm:$0xf]
        %v259 = vld [vmem:[%s2 + $0x48] sm:$0xf]
        %v260 = vld [vmem:[%s2 + $0x4c] sm:$0xf]
        %v281 = vunpack.c.l.b16 %v241
        %v282 = vunpack.c.l.b16 %v242
        %v283 = vunpack.c.l.b16 %v243
        %v284 = vunpack.c.l.b16 %v244
        %v285 = vunpack.c.l.b16 %v245
        %v286 = vunpack.c.l.b16 %v246
        %v287 = vunpack.c.l.b16 %v247
        %v288 = vunpack.c.l.b16 %v248
        %v289 = vunpack.c.l.b16 %v249
        %v290 = vunpack.c.l.b16 %v250
        %v291 = vunpack.c.l.b16 %v251
        %v292 = vunpack.c.l.b16 %v252
        %v293 = vunpack.c.l.b16 %v253
        %v294 = vunpack.c.l.b16 %v254
        %v295 = vunpack.c.l.b16 %v255
        %v296 = vunpack.c.l.b16 %v256
        %v297 = vunpack.c.l.b16 %v257
        %v298 = vunpack.c.l.b16 %v258
        %v299 = vunpack.c.l.b16 %v259
        %v300 = vunpack.c.l.b16 %v260
        %v301 = vpack.c.b16 %v282, %v281
        %v302 = vpack.c.b16 %v284, %v283
        %v303 = vpack.c.b16 %v286, %v285
        %v304 = vpack.c.b16 %v288, %v287
        %v305 = vpack.c.b16 %v290, %v289
        %v306 = vpack.c.b16 %v292, %v291
        %v307 = vpack.c.b16 %v294, %v293
        %v308 = vpack.c.b16 %v296, %v295
        %v309 = vpack.c.b16 %v298, %v297
        %v310 = vpack.c.b16 %v300, %v299
        %v319 = vunpack.c.l.b16 %v233
        %v320 = vunpack.c.h.b16 %v233
        %v321 = vunpack.c.l.b16 %v234
        %v322 = vunpack.c.h.b16 %v234
        %v323 = vunpack.c.l.b16 %v235
        %v324 = vunpack.c.h.b16 %v235
        %v325 = vunpack.c.l.b16 %v236
        %v326 = vunpack.c.h.b16 %v236
        %v327 = vunpack.c.l.b16 %v237
        %v328 = vunpack.c.h.b16 %v237
        %v329 = vunpack.c.l.b16 %v238
        %v330 = vunpack.c.h.b16 %v238
        %v331 = vunpack.c.l.b16 %v239
        %v332 = vunpack.c.h.b16 %v239
        %v333 = vunpack.c.l.b16 %v240
        %v334 = vunpack.c.h.b16 %v240
        %v335 = vpack.c.b16 %v323, %v319
        %v336 = vpack.c.b16 %v324, %v320
        %v337 = vpack.c.b16 %v325, %v321
        %v338 = vpack.c.b16 %v326, %v322
        %v339 = vpack.c.b16 %v331, %v327
        %v340 = vpack.c.b16 %v332, %v328
        %v341 = vpack.c.b16 %v333, %v329
        %v342 = vpack.c.b16 %v334, %v330
        %vm351 = vcmask 261120
        %v353 = vsel %vm351, %v301, 0
        %v356 = vsel %vm351, %v302, 0
        %v359 = vsel %vm351, %v303, 0
        %v362 = vsel %vm351, %v304, 0
        %v365 = vsel %vm351, %v305, 0
        %v368 = vsel %vm351, %v306, 0
        %v371 = vsel %vm351, %v307, 0
        %v374 = vsel %vm351, %v308, 0
        %v377 = vsel %vm351, %v309, 0
        %v380 = vsel %vm351, %v310, 0
        %382 = vmatprep.subr.bf16.mxu0 %v336
        %383 = vmatpush1.bf16.msra.mxu0 %v335
        %384 = vmatprep.subr.bf16.mxu0 %v340
        %385 = vmatpush1.bf16.msra.mxu0 %v339
        %386 = vmatprep.subr.bf16.mxu0 0
        %387 = vmatpush1.bf16.msra.mxu0 0
        %388 = vmatprep.subr.bf16.mxu0 0
        %389 = vmatpush1.bf16.msra.mxu0 0
        %390 = vmatprep.subr.bf16.mxu0 0
        %391 = vmatpush1.bf16.msra.mxu0 0
        %392 = vmatprep.subr.bf16.mxu0 0
        %393 = vmatpush1.bf16.msra.mxu0 0
        %394 = vmatprep.subr.bf16.mxu0 0
        %395 = vmatpush1.bf16.msra.mxu0 0
        %396 = vmatprep.subr.bf16.mxu0 0
        %397 = vmatpush1.bf16.msra.mxu0 0
        %398 = vmatprep.subr.bf16.mxu0 0
        %399 = vmatpush1.bf16.msra.mxu0 0
        %400 = vmatprep.subr.bf16.mxu0 0
        %401 = vmatpush1.bf16.msra.mxu0 0
        %402 = vmatprep.subr.bf16.mxu0 0
        %403 = vmatpush1.bf16.msra.mxu0 0
        %404 = vmatprep.subr.bf16.mxu0 0
        %405 = vmatpush1.bf16.msra.mxu0 0
        %406 = vmatprep.subr.bf16.mxu0 0
        %407 = vmatpush1.bf16.msra.mxu0 0
        %408 = vmatprep.subr.bf16.mxu0 0
        %409 = vmatpush1.bf16.msra.mxu0 0
        %410 = vmatprep.subr.bf16.mxu0 0
        %411 = vmatpush1.bf16.msra.mxu0 0
        %412 = vmatprep.subr.bf16.mxu0 0
        %413 = vmatpush1.bf16.msra.mxu0 0
        %414 = vmatprep.mubr.bf16.mxu0 0
        %415 = vmatmul.mubr.bf16.gmra.mrb[0].mxu0 %v353
        %v416 = vpop.f32.mrb[0].mxu0
        %v417 = vadd.f32 0.0, %v416
        %v418 = vpop.f32.mrb[0].mxu0
        %v419 = vadd.f32 0.0, %v418
        %v420 = vpop.f32.mrb[0].mxu0
        %v421 = vadd.f32 0.0, %v420
        %v422 = vpop.f32.mrb[0].mxu0
        %v423 = vadd.f32 0.0, %v422
        %424 = vmatprep.mubr.bf16.mxu0 0
        %425 = vmatmul.mubr.bf16.gmra.mrb[0].mxu0 %v356
        %v426 = vpop.f32.mrb[0].mxu0
        %v427 = vadd.f32 0.0, %v426
        %v428 = vpop.f32.mrb[0].mxu0
        %v429 = vadd.f32 0.0, %v428
        %v430 = vpop.f32.mrb[0].mxu0
        %v431 = vadd.f32 0.0, %v430
        %v432 = vpop.f32.mrb[0].mxu0
        %v433 = vadd.f32 0.0, %v432
        %434 = vmatprep.mubr.bf16.mxu0 0
        %435 = vmatmul.mubr.bf16.gmra.mrb[0].mxu0 %v359
        %v436 = vpop.f32.mrb[0].mxu0
        %v437 = vadd.f32 0.0, %v436
        %v438 = vpop.f32.mrb[0].mxu0
        %v439 = vadd.f32 0.0, %v438
        %v440 = vpop.f32.mrb[0].mxu0
        %v441 = vadd.f32 0.0, %v440
        %v442 = vpop.f32.mrb[0].mxu0
        %v443 = vadd.f32 0.0, %v442
        %444 = vmatprep.mubr.bf16.mxu0 0
        %445 = vmatmul.mubr.bf16.gmra.mrb[0].mxu0 %v362
        %v446 = vpop.f32.mrb[0].mxu0
        %v447 = vadd.f32 0.0, %v446
        %v448 = vpop.f32.mrb[0].mxu0
        %v449 = vadd.f32 0.0, %v448
        %v450 = vpop.f32.mrb[0].mxu0
        %v451 = vadd.f32 0.0, %v450
        %v452 = vpop.f32.mrb[0].mxu0
        %v453 = vadd.f32 0.0, %v452
        %454 = vmatprep.mubr.bf16.mxu0 0
        %455 = vmatmul.mubr.bf16.gmra.mrb[0].mxu0 %v365
        %v456 = vpop.f32.mrb[0].mxu0
        %v457 = vadd.f32 0.0, %v456
        %v458 = vpop.f32.mrb[0].mxu0
        %v459 = vadd.f32 0.0, %v458
        %v460 = vpop.f32.mrb[0].mxu0
        %v461 = vadd.f32 0.0, %v460
        %v462 = vpop.f32.mrb[0].mxu0
        %v463 = vadd.f32 0.0, %v462
        %464 = vmatprep.mubr.bf16.mxu0 0
        %465 = vmatmul.mubr.bf16.gmra.mrb[0].mxu0 %v368
        %v466 = vpop.f32.mrb[0].mxu0
        %v467 = vadd.f32 0.0, %v466
        %v468 = vpop.f32.mrb[0].mxu0
        %v469 = vadd.f32 0.0, %v468
        %v470 = vpop.f32.mrb[0].mxu0
        %v471 = vadd.f32 0.0, %v470
        %v472 = vpop.f32.mrb[0].mxu0
        %v473 = vadd.f32 0.0, %v472
        %474 = vmatprep.mubr.bf16.mxu0 0
        %475 = vmatmul.mubr.bf16.gmra.mrb[0].mxu0 %v371
        %v476 = vpop.f32.mrb[0].mxu0
        %v477 = vadd.f32 0.0, %v476
        %v478 = vpop.f32.mrb[0].mxu0
        %v479 = vadd.f32 0.0, %v478
        %v480 = vpop.f32.mrb[0].mxu0
        %v481 = vadd.f32 0.0, %v480
        %v482 = vpop.f32.mrb[0].mxu0
        %v483 = vadd.f32 0.0, %v482
        %484 = vmatprep.mubr.bf16.mxu0 0
        %485 = vmatmul.mubr.bf16.gmra.mrb[0].mxu0 %v374
        %v486 = vpop.f32.mrb[0].mxu0
        %v487 = vadd.f32 0.0, %v486
        %v488 = vpop.f32.mrb[0].mxu0
        %v489 = vadd.f32 0.0, %v488
        %v490 = vpop.f32.mrb[0].mxu0
        %v491 = vadd.f32 0.0, %v490
        %v492 = vpop.f32.mrb[0].mxu0
        %v493 = vadd.f32 0.0, %v492
        %494 = vmatprep.mubr.bf16.mxu0 0
        %495 = vmatmul.mubr.bf16.gmra.mrb[0].mxu0 %v377
        %v496 = vpop.f32.mrb[0].mxu0
        %v497 = vadd.f32 0.0, %v496
        %v498 = vpop.f32.mrb[0].mxu0
        %v499 = vadd.f32 0.0, %v498
        %v500 = vpop.f32.mrb[0].mxu0
        %v501 = vadd.f32 0.0, %v500
        %v502 = vpop.f32.mrb[0].mxu0
        %v503 = vadd.f32 0.0, %v502
        %504 = vmatprep.mubr.bf16.mxu0 0
        %505 = vmatmul.mubr.bf16.gmra.mrb[0].mxu0 %v380
        %v506 = vpop.f32.mrb[0].mxu0
        %v507 = vadd.f32 0.0, %v506
        %v508 = vpop.f32.mrb[0].mxu0
        %v509 = vadd.f32 0.0, %v508
        %v510 = vpop.f32.mrb[0].mxu0
        %v511 = vadd.f32 0.0, %v510
        %v512 = vpop.f32.mrb[0].mxu0
        %v513 = vadd.f32 0.0, %v512
        %514 = vdwg.mxu0
        %515 = vmatprep.subr.bf16.mxu0 %v338
        %516 = vmatpush1.bf16.msra.mxu0 %v337
        %517 = vmatprep.subr.bf16.mxu0 %v342
        %518 = vmatpush1.bf16.msra.mxu0 %v341
        %519 = vmatprep.subr.bf16.mxu0 0
        %520 = vmatpush1.bf16.msra.mxu0 0
        %521 = vmatprep.subr.bf16.mxu0 0
        %522 = vmatpush1.bf16.msra.mxu0 0
        %523 = vmatprep.subr.bf16.mxu0 0
        %524 = vmatpush1.bf16.msra.mxu0 0
        %525 = vmatprep.subr.bf16.mxu0 0
        %526 = vmatpush1.bf16.msra.mxu0 0
        %527 = vmatprep.subr.bf16.mxu0 0
        %528 = vmatpush1.bf16.msra.mxu0 0
        %529 = vmatprep.subr.bf16.mxu0 0
        %530 = vmatpush1.bf16.msra.mxu0 0
        %531 = vmatprep.subr.bf16.mxu0 0
        %532 = vmatpush1.bf16.msra.mxu0 0
        %533 = vmatprep.subr.bf16.mxu0 0
        %534 = vmatpush1.bf16.msra.mxu0 0
        %535 = vmatprep.subr.bf16.mxu0 0
        %536 = vmatpush1.bf16.msra.mxu0 0
        %537 = vmatprep.subr.bf16.mxu0 0
        %538 = vmatpush1.bf16.msra.mxu0 0
        %539 = vmatprep.subr.bf16.mxu0 0
        %540 = vmatpush1.bf16.msra.mxu0 0
        %541 = vmatprep.subr.bf16.mxu0 0
        %542 = vmatpush1.bf16.msra.mxu0 0
        %543 = vmatprep.subr.bf16.mxu0 0
        %544 = vmatpush1.bf16.msra.mxu0 0
        %545 = vmatprep.subr.bf16.mxu0 0
        %546 = vmatpush1.bf16.msra.mxu0 0
        %547 = vmatprep.mubr.bf16.mxu0 0
        %548 = vmatmul.mubr.bf16.gmra.mrb[0].mxu0 %v353
        %v549 = vpop.f32.mrb[0].mxu0
        %v550 = vadd.f32 0.0, %v549
        %v551 = vpop.f32.mrb[0].mxu0
        %v552 = vadd.f32 0.0, %v551
        %v553 = vpop.f32.mrb[0].mxu0
        %v554 = vadd.f32 0.0, %v553
        %v555 = vpop.f32.mrb[0].mxu0
        %v556 = vadd.f32 0.0, %v555
        %557 = vmatprep.mubr.bf16.mxu0 0
        %558 = vmatmul.mubr.bf16.gmra.mrb[0].mxu0 %v356
        %v559 = vpop.f32.mrb[0].mxu0
        %v560 = vadd.f32 0.0, %v559
        %v561 = vpop.f32.mrb[0].mxu0
        %v562 = vadd.f32 0.0, %v561
        %v563 = vpop.f32.mrb[0].mxu0
        %v564 = vadd.f32 0.0, %v563
        %v565 = vpop.f32.mrb[0].mxu0
        %v566 = vadd.f32 0.0, %v565
        %567 = vmatprep.mubr.bf16.mxu0 0
        %568 = vmatmul.mubr.bf16.gmra.mrb[0].mxu0 %v359
        %v569 = vpop.f32.mrb[0].mxu0
        %v570 = vadd.f32 0.0, %v569
        %v571 = vpop.f32.mrb[0].mxu0
        %v572 = vadd.f32 0.0, %v571
        %v573 = vpop.f32.mrb[0].mxu0
        %v574 = vadd.f32 0.0, %v573
        %v575 = vpop.f32.mrb[0].mxu0
        %v576 = vadd.f32 0.0, %v575
        %577 = vmatprep.mubr.bf16.mxu0 0
        %578 = vmatmul.mubr.bf16.gmra.mrb[0].mxu0 %v362
        %v579 = vpop.f32.mrb[0].mxu0
        %v580 = vadd.f32 0.0, %v579
        %v581 = vpop.f32.mrb[0].mxu0
        %v582 = vadd.f32 0.0, %v581
        %v583 = vpop.f32.mrb[0].mxu0
        %v584 = vadd.f32 0.0, %v583
        %v585 = vpop.f32.mrb[0].mxu0
        %v586 = vadd.f32 0.0, %v585
        %587 = vmatprep.mubr.bf16.mxu0 0
        %588 = vmatmul.mubr.bf16.gmra.mrb[0].mxu0 %v365
        %v589 = vpop.f32.mrb[0].mxu0
        %v590 = vadd.f32 0.0, %v589
        %v591 = vpop.f32.mrb[0].mxu0
        %v592 = vadd.f32 0.0, %v591
        %v593 = vpop.f32.mrb[0].mxu0
        %v594 = vadd.f32 0.0, %v593
        %v595 = vpop.f32.mrb[0].mxu0
        %v596 = vadd.f32 0.0, %v595
        %597 = vmatprep.mubr.bf16.mxu0 0
        %598 = vmatmul.mubr.bf16.gmra.mrb[0].mxu0 %v368
        %v599 = vpop.f32.mrb[0].mxu0
        %v600 = vadd.f32 0.0, %v599
        %v601 = vpop.f32.mrb[0].mxu0
        %v602 = vadd.f32 0.0, %v601
        %v603 = vpop.f32.mrb[0].mxu0
        %v604 = vadd.f32 0.0, %v603
        %v605 = vpop.f32.mrb[0].mxu0
        %v606 = vadd.f32 0.0, %v605
        %607 = vmatprep.mubr.bf16.mxu0 0
        %608 = vmatmul.mubr.bf16.gmra.mrb[0].mxu0 %v371
        %v609 = vpop.f32.mrb[0].mxu0
        %v610 = vadd.f32 0.0, %v609
        %v611 = vpop.f32.mrb[0].mxu0
        %v612 = vadd.f32 0.0, %v611
        %v613 = vpop.f32.mrb[0].mxu0
        %v614 = vadd.f32 0.0, %v613
        %v615 = vpop.f32.mrb[0].mxu0
        %v616 = vadd.f32 0.0, %v615
        %617 = vmatprep.mubr.bf16.mxu0 0
        %618 = vmatmul.mubr.bf16.gmra.mrb[0].mxu0 %v374
        %v619 = vpop.f32.mrb[0].mxu0
        %v620 = vadd.f32 0.0, %v619
        %v621 = vpop.f32.mrb[0].mxu0
        %v622 = vadd.f32 0.0, %v621
        %v623 = vpop.f32.mrb[0].mxu0
        %v624 = vadd.f32 0.0, %v623
        %v625 = vpop.f32.mrb[0].mxu0
        %v626 = vadd.f32 0.0, %v625
        %627 = vmatprep.mubr.bf16.mxu0 0
        %628 = vmatmul.mubr.bf16.gmra.mrb[0].mxu0 %v377
        %v629 = vpop.f32.mrb[0].mxu0
        %v630 = vadd.f32 0.0, %v629
        %v631 = vpop.f32.mrb[0].mxu0
        %v632 = vadd.f32 0.0, %v631
        %v633 = vpop.f32.mrb[0].mxu0
        %v634 = vadd.f32 0.0, %v633
        %v635 = vpop.f32.mrb[0].mxu0
        %v636 = vadd.f32 0.0, %v635
        %637 = vmatprep.mubr.bf16.mxu0 0
        %638 = vmatmul.mubr.bf16.gmra.mrb[0].mxu0 %v380
        %v639 = vpop.f32.mrb[0].mxu0
        %v640 = vadd.f32 0.0, %v639
        %v641 = vpop.f32.mrb[0].mxu0
        %v642 = vadd.f32 0.0, %v641
        %v643 = vpop.f32.mrb[0].mxu0
        %v644 = vadd.f32 0.0, %v643
        %v645 = vpop.f32.mrb[0].mxu0
        %v646 = vadd.f32 0.0, %v645
        %647 = vdwg.mxu0
        %v648 = vld [vmem:[%s201] sm:$0xff]
        %v649 = vld [vmem:[%s201 + $0x8] sm:$0xff]
        %v650 = vld [vmem:[%s201 + $0x10] sm:$0xff]
        %v651 = vld [vmem:[%s201 + $0x18] sm:$0xff]
        %v652 = vld [vmem:[%s201 + $0x20] sm:$0xff]
        %v653 = vld [vmem:[%s201 + $0x28] sm:$0xff]
        %v654 = vld [vmem:[%s201 + $0x30] sm:$0xff]
        %v655 = vld [vmem:[%s201 + $0x38] sm:$0xff]
        %v656 = vunpack.c.l.bf16 %v648
        %v657 = vunpack.c.h.bf16 %v648
        %v658 = vunpack.c.l.bf16 %v649
        %v659 = vunpack.c.h.bf16 %v649
        %v660 = vunpack.c.l.bf16 %v650
        %v661 = vunpack.c.h.bf16 %v650
        %v662 = vunpack.c.l.bf16 %v651
        %v663 = vunpack.c.h.bf16 %v651
        %v664 = vunpack.c.l.bf16 %v652
        %v665 = vunpack.c.h.bf16 %v652
        %v666 = vunpack.c.l.bf16 %v653
        %v667 = vunpack.c.h.bf16 %v653
        %v668 = vunpack.c.l.bf16 %v654
        %v669 = vunpack.c.h.bf16 %v654
        %v670 = vunpack.c.l.bf16 %v655
        %v671 = vunpack.c.h.bf16 %v655
        %v672 = vmul.f32 %v417, %v656
        %v673 = vmul.f32 %v419, %v657
        %v674 = vmul.f32 %v550, %v658
        %v675 = vmul.f32 %v552, %v659
        %v676 = vmul.f32 %v421, %v660
        %v677 = vmul.f32 %v423, %v661
        %v678 = vmul.f32 %v554, %v662
        %v679 = vmul.f32 %v556, %v663
        %v680 = vmul.f32 %v427, %v664
        %v681 = vmul.f32 %v429, %v665
        %v682 = vmul.f32 %v560, %v666
        %v683 = vmul.f32 %v562, %v667
        %v684 = vmul.f32 %v431, %v668
        %v685 = vmul.f32 %v433, %v669
        %v686 = vmul.f32 %v564, %v670
        %v687 = vmul.f32 %v566, %v671
        %v688 = vmul.f32 %v437, %v656
        %v689 = vmul.f32 %v439, %v657
        %v690 = vmul.f32 %v570, %v658
        %v691 = vmul.f32 %v572, %v659
        %v692 = vmul.f32 %v441, %v660
        %v693 = vmul.f32 %v443, %v661
        %v694 = vmul.f32 %v574, %v662
        %v695 = vmul.f32 %v576, %v663
        %v696 = vmul.f32 %v447, %v664
        %v697 = vmul.f32 %v449, %v665
        %v698 = vmul.f32 %v580, %v666
        %v699 = vmul.f32 %v582, %v667
        %v700 = vmul.f32 %v451, %v668
        %v701 = vmul.f32 %v453, %v669
        %v702 = vmul.f32 %v584, %v670
        %v703 = vmul.f32 %v586, %v671
        %v704 = vmul.f32 %v457, %v656
        %v705 = vmul.f32 %v459, %v657
        %v706 = vmul.f32 %v590, %v658
        %v707 = vmul.f32 %v592, %v659
        %v708 = vmul.f32 %v461, %v660
        %v709 = vmul.f32 %v463, %v661
        %v710 = vmul.f32 %v594, %v662
        %v711 = vmul.f32 %v596, %v663
        %v712 = vmul.f32 %v467, %v664
        %v713 = vmul.f32 %v469, %v665
        %v714 = vmul.f32 %v600, %v666
        %v715 = vmul.f32 %v602, %v667
        %v716 = vmul.f32 %v471, %v668
        %v717 = vmul.f32 %v473, %v669
        %v718 = vmul.f32 %v604, %v670
        %v719 = vmul.f32 %v606, %v671
        %v720 = vmul.f32 %v477, %v656
        %v721 = vmul.f32 %v479, %v657
        %v722 = vmul.f32 %v610, %v658
        %v723 = vmul.f32 %v612, %v659
        %v724 = vmul.f32 %v481, %v660
        %v725 = vmul.f32 %v483, %v661
        %v726 = vmul.f32 %v614, %v662
        %v727 = vmul.f32 %v616, %v663
        %v728 = vmul.f32 %v487, %v664
        %v729 = vmul.f32 %v489, %v665
        %v730 = vmul.f32 %v620, %v666
        %v731 = vmul.f32 %v622, %v667
        %v732 = vmul.f32 %v491, %v668
        %v733 = vmul.f32 %v493, %v669
        %v734 = vmul.f32 %v624, %v670
        %v735 = vmul.f32 %v626, %v671
        %v736 = vmul.f32 %v497, %v656
        %v737 = vmul.f32 %v499, %v657
        %v738 = vmul.f32 %v630, %v658
        %v739 = vmul.f32 %v632, %v659
        %v740 = vmul.f32 %v501, %v660
        %v741 = vmul.f32 %v503, %v661
        %v742 = vmul.f32 %v634, %v662
        %v743 = vmul.f32 %v636, %v663
        %v744 = vmul.f32 %v507, %v664
        %v745 = vmul.f32 %v509, %v665
        %v746 = vmul.f32 %v640, %v666
        %v747 = vmul.f32 %v642, %v667
        %v748 = vmul.f32 %v511, %v668
        %v749 = vmul.f32 %v513, %v669
        %v750 = vmul.f32 %v644, %v670
        %v751 = vmul.f32 %v646, %v671
        %v752 = vadd.f32 %v672, %v676
        %v753 = vadd.f32 %v752, %v680
        %v754 = vadd.f32 %v753, %v684
        %v755 = vrot.slane %v754, 4
        %v756 = vadd.f32 %v754, %v755
        %v757 = vrot.slane %v756, 2
        %v758 = vadd.f32 %v756, %v757
        %v759 = vrot.slane %v758, 1
        %v760 = vadd.f32 %v758, %v759
        %v761 = vadd.f32 %v673, %v677
        %v762 = vadd.f32 %v761, %v681
        %v763 = vadd.f32 %v762, %v685
        %v764 = vrot.slane %v763, 4
        %v765 = vadd.f32 %v763, %v764
        %v766 = vrot.slane %v765, 2
        %v767 = vadd.f32 %v765, %v766
        %v768 = vrot.slane %v767, 1
        %v769 = vadd.f32 %v767, %v768
        %v770 = vadd.f32 %v674, %v678
        %v771 = vadd.f32 %v770, %v682
        %v772 = vadd.f32 %v771, %v686
        %v773 = vrot.slane %v772, 4
        %v774 = vadd.f32 %v772, %v773
        %v775 = vrot.slane %v774, 2
        %v776 = vadd.f32 %v774, %v775
        %v777 = vrot.slane %v776, 1
        %v778 = vadd.f32 %v776, %v777
        %v779 = vadd.f32 %v675, %v679
        %v780 = vadd.f32 %v779, %v683
        %v781 = vadd.f32 %v780, %v687
        %v782 = vrot.slane %v781, 4
        %v783 = vadd.f32 %v781, %v782
        %v784 = vrot.slane %v783, 2
        %v785 = vadd.f32 %v783, %v784
        %v786 = vrot.slane %v785, 1
        %v787 = vadd.f32 %v785, %v786
        %v788 = vadd.f32 %v688, %v692
        %v789 = vadd.f32 %v788, %v696
        %v790 = vadd.f32 %v789, %v700
        %v791 = vrot.slane %v790, 4
        %v792 = vadd.f32 %v790, %v791
        %v793 = vrot.slane %v792, 2
        %v794 = vadd.f32 %v792, %v793
        %v795 = vrot.slane %v794, 1
        %v796 = vadd.f32 %v794, %v795
        %v797 = vadd.f32 %v689, %v693
        %v798 = vadd.f32 %v797, %v697
        %v799 = vadd.f32 %v798, %v701
        %v800 = vrot.slane %v799, 4
        %v801 = vadd.f32 %v799, %v800
        %v802 = vrot.slane %v801, 2
        %v803 = vadd.f32 %v801, %v802
        %v804 = vrot.slane %v803, 1
        %v805 = vadd.f32 %v803, %v804
        %v806 = vadd.f32 %v690, %v694
        %v807 = vadd.f32 %v806, %v698
        %v808 = vadd.f32 %v807, %v702
        %v809 = vrot.slane %v808, 4
        %v810 = vadd.f32 %v808, %v809
        %v811 = vrot.slane %v810, 2
        %v812 = vadd.f32 %v810, %v811
        %v813 = vrot.slane %v812, 1
        %v814 = vadd.f32 %v812, %v813
        %v815 = vadd.f32 %v691, %v695
        %v816 = vadd.f32 %v815, %v699
        %v817 = vadd.f32 %v816, %v703
        %v818 = vrot.slane %v817, 4
        %v819 = vadd.f32 %v817, %v818
        %v820 = vrot.slane %v819, 2
        %v821 = vadd.f32 %v819, %v820
        %v822 = vrot.slane %v821, 1
        %v823 = vadd.f32 %v821, %v822
        %v824 = vadd.f32 %v704, %v708
        %v825 = vadd.f32 %v824, %v712
        %v826 = vadd.f32 %v825, %v716
        %v827 = vrot.slane %v826, 4
        %v828 = vadd.f32 %v826, %v827
        %v829 = vrot.slane %v828, 2
        %v830 = vadd.f32 %v828, %v829
        %v831 = vrot.slane %v830, 1
        %v832 = vadd.f32 %v830, %v831
        %v833 = vadd.f32 %v705, %v709
        %v834 = vadd.f32 %v833, %v713
        %v835 = vadd.f32 %v834, %v717
        %v836 = vrot.slane %v835, 4
        %v837 = vadd.f32 %v835, %v836
        %v838 = vrot.slane %v837, 2
        %v839 = vadd.f32 %v837, %v838
        %v840 = vrot.slane %v839, 1
        %v841 = vadd.f32 %v839, %v840
        %v842 = vadd.f32 %v706, %v710
        %v843 = vadd.f32 %v842, %v714
        %v844 = vadd.f32 %v843, %v718
        %v845 = vrot.slane %v844, 4
        %v846 = vadd.f32 %v844, %v845
        %v847 = vrot.slane %v846, 2
        %v848 = vadd.f32 %v846, %v847
        %v849 = vrot.slane %v848, 1
        %v850 = vadd.f32 %v848, %v849
        %v851 = vadd.f32 %v707, %v711
        %v852 = vadd.f32 %v851, %v715
        %v853 = vadd.f32 %v852, %v719
        %v854 = vrot.slane %v853, 4
        %v855 = vadd.f32 %v853, %v854
        %v856 = vrot.slane %v855, 2
        %v857 = vadd.f32 %v855, %v856
        %v858 = vrot.slane %v857, 1
        %v859 = vadd.f32 %v857, %v858
        %v860 = vadd.f32 %v720, %v724
        %v861 = vadd.f32 %v860, %v728
        %v862 = vadd.f32 %v861, %v732
        %v863 = vrot.slane %v862, 4
        %v864 = vadd.f32 %v862, %v863
        %v865 = vrot.slane %v864, 2
        %v866 = vadd.f32 %v864, %v865
        %v867 = vrot.slane %v866, 1
        %v868 = vadd.f32 %v866, %v867
        %v869 = vadd.f32 %v721, %v725
        %v870 = vadd.f32 %v869, %v729
        %v871 = vadd.f32 %v870, %v733
        %v872 = vrot.slane %v871, 4
        %v873 = vadd.f32 %v871, %v872
        %v874 = vrot.slane %v873, 2
        %v875 = vadd.f32 %v873, %v874
        %v876 = vrot.slane %v875, 1
        %v877 = vadd.f32 %v875, %v876
        %v878 = vadd.f32 %v722, %v726
        %v879 = vadd.f32 %v878, %v730
        %v880 = vadd.f32 %v879, %v734
        %v881 = vrot.slane %v880, 4
        %v882 = vadd.f32 %v880, %v881
        %v883 = vrot.slane %v882, 2
        %v884 = vadd.f32 %v882, %v883
        %v885 = vrot.slane %v884, 1
        %v886 = vadd.f32 %v884, %v885
        %v887 = vadd.f32 %v723, %v727
        %v888 = vadd.f32 %v887, %v731
        %v889 = vadd.f32 %v888, %v735
        %v890 = vrot.slane %v889, 4
        %v891 = vadd.f32 %v889, %v890
        %v892 = vrot.slane %v891, 2
        %v893 = vadd.f32 %v891, %v892
        %v894 = vrot.slane %v893, 1
        %v895 = vadd.f32 %v893, %v894
        %v896 = vadd.f32 %v736, %v740
        %v897 = vadd.f32 %v896, %v744
        %v898 = vadd.f32 %v897, %v748
        %v899 = vrot.slane %v898, 4
        %v900 = vadd.f32 %v898, %v899
        %v901 = vrot.slane %v900, 2
        %v902 = vadd.f32 %v900, %v901
        %v903 = vrot.slane %v902, 1
        %v904 = vadd.f32 %v902, %v903
        %v905 = vadd.f32 %v737, %v741
        %v906 = vadd.f32 %v905, %v745
        %v907 = vadd.f32 %v906, %v749
        %v908 = vrot.slane %v907, 4
        %v909 = vadd.f32 %v907, %v908
        %v910 = vrot.slane %v909, 2
        %v911 = vadd.f32 %v909, %v910
        %v912 = vrot.slane %v911, 1
        %v913 = vadd.f32 %v911, %v912
        %v914 = vadd.f32 %v738, %v742
        %v915 = vadd.f32 %v914, %v746
        %v916 = vadd.f32 %v915, %v750
        %v917 = vrot.slane %v916, 4
        %v918 = vadd.f32 %v916, %v917
        %v919 = vrot.slane %v918, 2
        %v920 = vadd.f32 %v918, %v919
        %v921 = vrot.slane %v920, 1
        %v922 = vadd.f32 %v920, %v921
        %v923 = vadd.f32 %v739, %v743
        %v924 = vadd.f32 %v923, %v747
        %v925 = vadd.f32 %v924, %v751
        %v926 = vrot.slane %v925, 4
        %v927 = vadd.f32 %v925, %v926
        %v928 = vrot.slane %v927, 2
        %v929 = vadd.f32 %v927, %v928
        %v930 = vrot.slane %v929, 1
        %v931 = vadd.f32 %v929, %v930
        %v932 = vmax.f32 %v760, %v796
        %v933 = vmax.f32 %v932, %v832
        %v934 = vmax.f32 %v933, %v868
        %v935 = vmax.f32 %v934, %v904
        %v936 = vmax.f32 %v769, %v805
        %v937 = vmax.f32 %v936, %v841
        %v938 = vmax.f32 %v937, %v877
        %v939 = vmax.f32 %v938, %v913
        %v940 = vmax.f32 %v778, %v814
        %v941 = vmax.f32 %v940, %v850
        %v942 = vmax.f32 %v941, %v886
        %v943 = vmax.f32 %v942, %v922
        %v944 = vmax.f32 %v787, %v823
        %v945 = vmax.f32 %v944, %v859
        %v946 = vmax.f32 %v945, %v895
        %v947 = vmax.f32 %v946, %v931
        %v948 = vsub.f32 %v760, %v935
        %v949 = vsub.f32 %v769, %v939
        %v950 = vsub.f32 %v778, %v943
        %v951 = vsub.f32 %v787, %v947
        %v952 = vsub.f32 %v796, %v935
        %v953 = vsub.f32 %v805, %v939
        %v954 = vsub.f32 %v814, %v943
        %v955 = vsub.f32 %v823, %v947
        %v956 = vsub.f32 %v832, %v935
        %v957 = vsub.f32 %v841, %v939
        %v958 = vsub.f32 %v850, %v943
        %v959 = vsub.f32 %v859, %v947
        %v960 = vsub.f32 %v868, %v935
        %v961 = vsub.f32 %v877, %v939
        %v962 = vsub.f32 %v886, %v943
        %v963 = vsub.f32 %v895, %v947
        %v964 = vsub.f32 %v904, %v935
        %v965 = vsub.f32 %v913, %v939
        %v966 = vsub.f32 %v922, %v943
        %v967 = vsub.f32 %v931, %v947
        %v968 = vmul.f32 %v948, 1.442695
        %v969 = vpow.pop %v968
        %v970 = vmul.f32 %v949, 1.442695
        %v971 = vpow.pop %v970
        %v972 = vmul.f32 %v950, 1.442695
        %v973 = vpow.pop %v972
        %v974 = vmul.f32 %v951, 1.442695
        %v975 = vpow.pop %v974
        %v976 = vmul.f32 %v952, 1.442695
        %v977 = vpow.pop %v976
        %v978 = vmul.f32 %v953, 1.442695
        %v979 = vpow.pop %v978
        %v980 = vmul.f32 %v954, 1.442695
        %v981 = vpow.pop %v980
        %v982 = vmul.f32 %v955, 1.442695
        %v983 = vpow.pop %v982
        %v984 = vmul.f32 %v956, 1.442695
        %v985 = vpow.pop %v984
        %v986 = vmul.f32 %v957, 1.442695
        %v987 = vpow.pop %v986
        %v988 = vmul.f32 %v958, 1.442695
        %v989 = vpow.pop %v988
        %v990 = vmul.f32 %v959, 1.442695
        %v991 = vpow.pop %v990
        %v992 = vmul.f32 %v960, 1.442695
        %v993 = vpow.pop %v992
        %v994 = vmul.f32 %v961, 1.442695
        %v995 = vpow.pop %v994
        %v996 = vmul.f32 %v962, 1.442695
        %v997 = vpow.pop %v996
        %v998 = vmul.f32 %v963, 1.442695
        %v999 = vpow.pop %v998
        %v1000 = vmul.f32 %v964, 1.442695
        %v1001 = vpow.pop %v1000
        %v1002 = vmul.f32 %v965, 1.442695
        %v1003 = vpow.pop %v1002
        %v1004 = vmul.f32 %v966, 1.442695
        %v1005 = vpow.pop %v1004
        %v1006 = vmul.f32 %v967, 1.442695
        %v1007 = vpow.pop %v1006
        %v1028 = vrot.slane %v977, 7
        %vm1029 = vcmask 1041409
        %v1030 = vsel %vm1029, %v1028, %v969
        %v1031 = vrot.slane %v985, 6
        %vm1032 = vcmask 1042434
        %v1033 = vsel %vm1032, %v1031, %v1030
        %v1034 = vrot.slane %v993, 5
        %vm1035 = vcmask 1043459
        %v1036 = vsel %vm1035, %v1034, %v1033
        %v1037 = vrot.slane %v1001, 4
        %vm1038 = vcmask 1044484
        %v1039 = vsel %vm1038, %v1037, %v1036
        %v1040 = vrot.slane %v979, 7
        %v1041 = vsel %vm1029, %v1040, %v971
        %v1042 = vrot.slane %v987, 6
        %v1043 = vsel %vm1032, %v1042, %v1041
        %v1044 = vrot.slane %v995, 5
        %v1045 = vsel %vm1035, %v1044, %v1043
        %v1046 = vrot.slane %v1003, 4
        %v1047 = vsel %vm1038, %v1046, %v1045
        %v1048 = vrot.slane %v981, 7
        %v1049 = vsel %vm1029, %v1048, %v973
        %v1050 = vrot.slane %v989, 6
        %v1051 = vsel %vm1032, %v1050, %v1049
        %v1052 = vrot.slane %v997, 5
        %v1053 = vsel %vm1035, %v1052, %v1051
        %v1054 = vrot.slane %v1005, 4
        %v1055 = vsel %vm1038, %v1054, %v1053
        %v1056 = vrot.slane %v983, 7
        %v1057 = vsel %vm1029, %v1056, %v975
        %v1058 = vrot.slane %v991, 6
        %v1059 = vsel %vm1032, %v1058, %v1057
        %v1060 = vrot.slane %v999, 5
        %v1061 = vsel %vm1035, %v1060, %v1059
        %v1062 = vrot.slane %v1007, 4
        %v1063 = vsel %vm1038, %v1062, %v1061
        %vm1068 = vcmask 1044480
        %v1069 = vsel %vm1068, %v1039, 0.0
        %v1070 = vrot.slane %v1069, 4
        %v1071 = vadd.f32 %v1069, %v1070
        %v1072 = vrot.slane %v1071, 2
        %v1073 = vadd.f32 %v1071, %v1072
        %v1074 = vrot.slane %v1073, 1
        %v1075 = vadd.f32 %v1073, %v1074
        %v1076 = vsel %vm1068, %v1047, 0.0
        %v1077 = vrot.slane %v1076, 4
        %v1078 = vadd.f32 %v1076, %v1077
        %v1079 = vrot.slane %v1078, 2
        %v1080 = vadd.f32 %v1078, %v1079
        %v1081 = vrot.slane %v1080, 1
        %v1082 = vadd.f32 %v1080, %v1081
        %v1083 = vsel %vm1068, %v1055, 0.0
        %v1084 = vrot.slane %v1083, 4
        %v1085 = vadd.f32 %v1083, %v1084
        %v1086 = vrot.slane %v1085, 2
        %v1087 = vadd.f32 %v1085, %v1086
        %v1088 = vrot.slane %v1087, 1
        %v1089 = vadd.f32 %v1087, %v1088
        %v1090 = vsel %vm1068, %v1063, 0.0
        %v1091 = vrot.slane %v1090, 4
        %v1092 = vadd.f32 %v1090, %v1091
        %v1093 = vrot.slane %v1092, 2
        %v1094 = vadd.f32 %v1092, %v1093
        %v1095 = vrot.slane %v1094, 1
        %v1096 = vadd.f32 %v1094, %v1095
        %v1097 = vmul.f32 %v977, 2.0
        %v1098 = vmul.f32 %v979, 2.0
        %v1099 = vmul.f32 %v981, 2.0
        %v1100 = vmul.f32 %v983, 2.0
        %v1101 = vadd.f32 %v969, %v1097
        %v1102 = vadd.f32 %v971, %v1098
        %v1103 = vadd.f32 %v973, %v1099
        %v1104 = vadd.f32 %v975, %v1100
        %v1105 = vmul.f32 %v985, 3.0
        %v1106 = vmul.f32 %v987, 3.0
        %v1107 = vmul.f32 %v989, 3.0
        %v1108 = vmul.f32 %v991, 3.0
        %v1109 = vadd.f32 %v1101, %v1105
        %v1110 = vadd.f32 %v1102, %v1106
        %v1111 = vadd.f32 %v1103, %v1107
        %v1112 = vadd.f32 %v1104, %v1108
        %v1113 = vmul.f32 %v993, 4.0
        %v1114 = vmul.f32 %v995, 4.0
        %v1115 = vmul.f32 %v997, 4.0
        %v1116 = vmul.f32 %v999, 4.0
        %v1117 = vadd.f32 %v1109, %v1113
        %v1118 = vadd.f32 %v1110, %v1114
        %v1119 = vadd.f32 %v1111, %v1115
        %v1120 = vadd.f32 %v1112, %v1116
        %v1121 = vmul.f32 %v1001, 5.0
        %v1122 = vmul.f32 %v1003, 5.0
        %v1123 = vmul.f32 %v1005, 5.0
        %v1124 = vmul.f32 %v1007, 5.0
        %v1125 = vadd.f32 %v1117, %v1121
        %v1126 = vadd.f32 %v1118, %v1122
        %v1127 = vadd.f32 %v1119, %v1123
        %v1128 = vadd.f32 %v1120, %v1124
        %v1129 = vrcp.pop %v1075
        %v1130 = vrcp.pop %v1082
        %v1131 = vrcp.pop %v1089
        %v1132 = vrcp.pop %v1096
        %v1133 = vmul.f32 %v1125, %v1129
        %v1134 = vmul.f32 %v1126, %v1130
        %v1135 = vmul.f32 %v1127, %v1131
        %v1136 = vmul.f32 %v1128, %v1132
        %v1141 = vcombine.low %v1133, %v1134
        %v1142 = vcombine.low %v1135, %v1136
        %v1144 = vunpack.c.l.s4 1966171168
        %v1145 = vunpack.c.0.s8 %v1144
        %v1146 = vlaneseq
        %v1147 = vshrl.u32 %v1146, 7
        %v1148 = vsub.s32 %v1145, %v1147
        %v1149 = vrot.slane %v1141, %v1148
        %v1151 = vunpack.c.l.s4 1966171168
        %v1152 = vunpack.c.0.s8 %v1151
        %v1153 = vlaneseq
        %v1154 = vshrl.u32 %v1153, 7
        %v1155 = vsub.s32 %v1152, %v1154
        %v1156 = vrot.slane %v1142, %v1155
        %v1157 = vcombine.low %v1149, %v1156
        %v1159 = vunpack.c.l.s4 1966171168
        %v1160 = vunpack.c.0.s8 %v1159
        %v1161 = vlaneseq
        %v1162 = vshrl.u32 %v1161, 7
        %v1163 = vsub.s32 %v1160, %v1162
        %v1164 = vrot.slane %v1157, %v1163
        %v1166 = vlaneseq
        %vm1167 = vcmp.ge.s32.totalorder %v1166, 0
        %vm1168 = vcmp.lt.s32.totalorder %v1166, 512
        %vm1169 = vmand %vm1167, %vm1168
        %1170 = vst.msk [vmem:[%s228] sm:$0xf] %vm1169, %v1164
        %s1171 = sand.u32 %s104, 1
        %s1172 = scalar_lea.sflag [#allocation4], %s1171
        %s1173 = sand.u32 %s104, 1
        %s1174 = smul.addr %s1173, 4
        %s1175 = scalar_lea.vmem [#allocation7], %s1174
        // Predicated region
        $region41: #{tpu_custom_call.1} parent=31 // pred_check
          %p1176 = pneg %p114
        $region42: #{tpu_custom_call.1} parent=31 // pred_check_branch
          %1178 = sbr.rel (%p1176) target = $region44
        $region43: #{tpu_custom_call.1} parent=31 // pred_region
          %s1179 = smul.u32 4, %s23
          %s1181 = ssub.s32 64, 64
          %1182 = vsyncadd %s1172, %s1181
          %s1183 = smul.addr %s1179, 16
          %s1184 = scalar_lea.hbm %s3, %s1183
          %s1186 = sshll.u32 %s1175, 4
          %s1187 = int_to_ptr.vmem [resolvable:$true] %s1186
          %1189 = dma.vmem_to_hbm [thread:$0]  %s1187, 64, %s1184, %s1172
        $region44: #{tpu_custom_call.1} parent=31 // pred_fallthru
          _
      $region32: #{tpu_custom_call.1} parent=5 // pred_fallthru
        _
      %p1190 = scmp.le.s32.totalorder 2, %s18
      // Predicated region
      $region45: #{tpu_custom_call.1} parent=5 // pred_check
        %p1191 = pneg %p1190
      $region46: #{tpu_custom_call.1} parent=5 // pred_check_branch
        %1193 = sbr.rel (%p1191) target = $region48
      $region47: #{tpu_custom_call.1} parent=5 // pred_region
        %s1194 = ssub.s32 %s18, 2
        // Predicated region
        $region49: #{tpu_custom_call.1} parent=47 // pred_check
          %p1195 = pneg %p120
        $region50: #{tpu_custom_call.1} parent=47 // pred_check_branch
          %1197 = sbr.rel (%p1195) target = $region52
        $region51: #{tpu_custom_call.1} parent=47 // pred_region
          %s1198 = sand.u32 %s105, 1
          %s1199 = scalar_lea.sflag [#allocation4], %s1198
          %s1200 = sand.u32 %s105, 1
          %s1201 = smul.addr %s1200, 4
          %s1202 = scalar_lea.vmem [#allocation7], %s1201
          %1203 = dma.done %s1199, 64
        $region52: #{tpu_custom_call.1} parent=47 // pred_fallthru
          _
      $region48: #{tpu_custom_call.1} parent=5 // pred_fallthru
        _
    $region6: #{tpu_custom_call.1} parent=1 // loop_footer
      %s22 = sadd.s32 1, %s18
    $region7: #{tpu_custom_call.1} parent=1 // loop_footer_branch
      %17 = sbr.rel target = $region3
    $region8: #{tpu_custom_call.1} parent=1 // loop_exit
      _
    %1204 = vsyncpa [#allocation3], 1
    %s1205 = scalar_lea.sflag [#allocation3], 1
    %1206 = vsyncpa %s1205, 1
    %1207 = vsyncpa [#allocation6], 1
    %s1208 = scalar_lea.sflag [#allocation6], 1
    %1209 = vsyncpa %s1208, 1
    %1210 = vsyncpa [#allocation4], 1
    %s1211 = scalar_lea.sflag [#allocation4], 1
    %1212 = vsyncpa %s1211, 1

// kernel: tpu_custom_call.1
$region0: #{tpu_custom_call.1}
  #allocation0 [shape = 'u32[]', space=smem, size = 0x4, offset = 0x4, fixed_abs, tag = 'smem constant byte address 0x4 - core index']
  #allocation1 [shape = 'u32[144,128]{1,0:T(1,128)}', space=vmem, size = 0x12000, scoped, tag = 'internal scratch']
  %s0 = inlined_call_operand.hbm [shape: bf16[32,1024], index: 0, kind: input, shape index: {}]
  %s1 = inlined_call_operand.hbm [shape: bf16[32,1024], index: 1, kind: input, shape index: {}]
  %s2 = inlined_call_operand.vmem [shape: bf16[160,32], index: 2, kind: input, shape index: {}]
  %s3 = inlined_call_operand.hbm [shape: f32[1,1024], index: 3, kind: output, shape index: {}]
  %s4 = sld [smem:[#allocation0]]
  $region53: #{tpu_custom_call.1} parent=0
    _
  %s6 = ssub.s32 1, %s4
  %s7 = scalar_select 0, %s6, %s4
  $region1: #{tpu_custom_call.1} parent=0
    #allocation2 [shape = 'u8[65536]{0}', space=vmem, size = 0x10000, scoped, tag = 'input window, operand 0']
    #allocation3 [shape = 's32[2]{0}', space=sflag, size = 0x8, scoped, tag = 'scoped memory for tpu_custom_call.1']
    #allocation4 [shape = 's32[2]{0}', space=sflag, size = 0x8, scoped, tag = 'scoped memory for tpu_custom_call.1']
    #allocation5 [shape = 'u8[65536]{0}', space=vmem, size = 0x10000, scoped, tag = 'input window, operand 1']
    #allocation6 [shape = 's32[2]{0}', space=sflag, size = 0x8, scoped, tag = 'scoped memory for tpu_custom_call.1']
    #allocation7 [shape = 'u8[4096]{0}', space=vmem, size = 0x1000, scoped, tag = 'output window, operand 0']
    %8 = vsyncpa [#allocation3], 0
    %s9 = scalar_lea.sflag [#allocation3], 1
    %10 = vsyncpa %s9, 0
    %11 = vsyncpa [#allocation6], 0
    %s12 = scalar_lea.sflag [#allocation6], 1
    %13 = vsyncpa %s12, 0
    %14 = vsyncpa [#allocation4], 0
    %s15 = scalar_lea.sflag [#allocation4], 1
    %16 = vsyncpa %s15, 0
    loop: start=0, step=1, limit=4
    $region2: #{tpu_custom_call.1} parent=1 // loop_pre_header
      _
    $region3: #{tpu_custom_call.1} parent=1 // loop_header
      %s18 = sphi 0, %s22
      %p19 = scmp.ge.s32.totalorder %s18, 4
      %s28 = sphi 0, %s30
      %s31 = sphi 0, %s28
      %s32 = sphi 0, %s31
      %s48 = sphi 0, %s32
      %s54 = sphi 0, %s56
      %s57 = sphi 0, %s54
      %s58 = sphi 0, %s57
      %s74 = sphi 0, %s58
      %s78 = sphi 0, %s78
      %s80 = sphi 0, %s78
      %s81 = sphi 0, %s80
      %s95 = sphi 0, %s81
      %s101 = sphi 0, %s103
      %s104 = sphi 0, %s101
      %s105 = sphi 0, %s104
      %s121 = sphi 0, %s105
    $region4: #{tpu_custom_call.1} parent=1 // loop_header_branch
      %21 = sbr.rel (%p19) target = $region8
    $region5: #{tpu_custom_call.1} parent=1 // loop_body
      %s23 = ssub.s32 %s18, 1
      %s24 = ssub.s32 %s18, 2
      %s25 = sadd.s32 %s18, 1
      %s26 = ssub.s32 %s18, %s25
      %p27 = scmp.eq.s32.totalorder %s26, 0
      %s29 = sadd.s32 %s28, 1
      %s30 = scalar_select %p27, %s28, %s29
      %p33 = pneg %p27
      %p34 = scmp.eq.s32.totalorder %s18, 1
      %p35 = por %p33, %p34
      %p36 = scmp.ne.s32.totalorder %s28, %s31
      %p37 = scmp.eq.s32.totalorder %s18, 0
      %p38 = por %p36, %p37
      %p39 = scmp.ne.s32.totalorder %s28, %s31
      %p40 = scmp.eq.s32.totalorder %s23, 1
      %p41 = por %p39, %p40
      %p42 = scmp.ne.s32.totalorder %s31, %s32
      %p43 = scmp.eq.s32.totalorder %s23, 0
      %p44 = por %p42, %p43
      %p45 = scmp.ne.s32.totalorder %s31, %s32
      %p46 = scmp.eq.s32.totalorder %s24, 1
      %p47 = por %p45, %p46
      %p49 = scmp.ne.s32.totalorder %s32, %s48
      %p50 = scmp.eq.s32.totalorder %s24, 0
      %p51 = por %p49, %p50
      %s52 = ssub.s32 %s18, %s25
      %p53 = scmp.eq.s32.totalorder %s52, 0
      %s55 = sadd.s32 %s54, 1
      %s56 = scalar_select %p53, %s54, %s55
      %p59 = pneg %p53
      %p60 = scmp.eq.s32.totalorder %s18, 1
      %p61 = por %p59, %p60
      %p62 = scmp.ne.s32.totalorder %s54, %s57
      %p63 = scmp.eq.s32.totalorder %s18, 0
      %p64 = por %p62, %p63
      %p65 = scmp.ne.s32.totalorder %s54, %s57
      %p66 = scmp.eq.s32.totalorder %s23, 1
      %p67 = por %p65, %p66
      %p68 = scmp.ne.s32.totalorder %s57, %s58
      %p69 = scmp.eq.s32.totalorder %s23, 0
      %p70 = por %p68, %p69
      %p71 = scmp.ne.s32.totalorder %s57, %s58
      %p72 = scmp.eq.s32.totalorder %s24, 1
      %p73 = por %p71, %p72
      %p75 = scmp.ne.s32.totalorder %s58, %s74
      %p76 = scmp.eq.s32.totalorder %s24, 0
      %p77 = por %p75, %p76
      %s79 = sadd.s32 %s78, 1
      %p82 = scmp.eq.s32.totalorder %s18, 1
      %p83 = scmp.ne.s32.totalorder %s78, %s80
      %p84 = scmp.eq.s32.totalorder %s18, 0
      %p85 = por %p83, %p84
      %p86 = scmp.ne.s32.totalorder %s78, %s80
      %p87 = scmp.eq.s32.totalorder %s23, 1
      %p88 = por %p86, %p87
      %p89 = scmp.ne.s32.totalorder %s80, %s81
      %p90 = scmp.eq.s32.totalorder %s23, 0
      %p91 = por %p89, %p90
      %p92 = scmp.ne.s32.totalorder %s80, %s81
      %p93 = scmp.eq.s32.totalorder %s24, 1
      %p94 = por %p92, %p93
      %p96 = scmp.ne.s32.totalorder %s81, %s95
      %p97 = scmp.eq.s32.totalorder %s24, 0
      %p98 = por %p96, %p97
      %s99 = ssub.s32 %s18, %s25
      %p100 = scmp.eq.s32.totalorder %s99, 0
      %s102 = sadd.s32 %s101, 1
      %s103 = scalar_select %p100, %s101, %s102
      %p106 = pneg %p100
      %p107 = scmp.eq.s32.totalorder %s18, 1
      %p108 = por %p106, %p107
      %p109 = scmp.ne.s32.totalorder %s101, %s104
      %p110 = scmp.eq.s32.totalorder %s18, 0
      %p111 = por %p109, %p110
      %p112 = scmp.ne.s32.totalorder %s101, %s104
      %p113 = scmp.eq.s32.totalorder %s23, 1
      %p114 = por %p112, %p113
      %p115 = scmp.ne.s32.totalorder %s104, %s105
      %p116 = scmp.eq.s32.totalorder %s23, 0
      %p117 = por %p115, %p116
      %p118 = scmp.ne.s32.totalorder %s104, %s105
      %p119 = scmp.eq.s32.totalorder %s24, 1
      %p120 = por %p118, %p119
      %p122 = scmp.ne.s32.totalorder %s105, %s121
      %p123 = scmp.eq.s32.totalorder %s24, 0
      %p124 = por %p122, %p123
      %p125 = scmp.le.s32.totalorder 1, %s18
      %p126 = scmp.lt.s32.totalorder %s18, 3
      %p127 = pnand %p125, %p126
      %p128 = pneg %p127
      // Predicated region
      $region9: #{tpu_custom_call.1} parent=5 // pred_check
        _
      $region10: #{tpu_custom_call.1} parent=5 // pred_check_branch
        %130 = sbr.rel (%p127) target = $region12
      $region11: #{tpu_custom_call.1} parent=5 // pred_region
        %s131 = ssub.s32 %s18, 1
        // Predicated region
        $region13: #{tpu_custom_call.1} parent=11 // pred_check
          %p132 = pneg %p91
        $region14: #{tpu_custom_call.1} parent=11 // pred_check_branch
          %134 = sbr.rel (%p132) target = $region16
        $region15: #{tpu_custom_call.1} parent=11 // pred_region
          _
        $region16: #{tpu_custom_call.1} parent=11 // pred_fallthru
          _
      $region12: #{tpu_custom_call.1} parent=5 // pred_fallthru
        _
      %p135 = scmp.lt.s32.totalorder %s18, 2
      // Predicated region
      $region17: #{tpu_custom_call.1} parent=5 // pred_check
        %p136 = pneg %p135
      $region18: #{tpu_custom_call.1} parent=5 // pred_check_branch
        %138 = sbr.rel (%p136) target = $region20
      $region19: #{tpu_custom_call.1} parent=5 // pred_region
        // Predicated region
        $region21: #{tpu_custom_call.1} parent=19 // pred_check
          %p139 = pneg %p38
        $region22: #{tpu_custom_call.1} parent=19 // pred_check_branch
          %141 = sbr.rel (%p139) target = $region24
        $region23: #{tpu_custom_call.1} parent=19 // pred_region
          %s142 = sand.u32 %s28, 1
          %s143 = scalar_lea.sflag [#allocation3], %s142
          %s144 = sand.u32 %s28, 1
          %s145 = smul.addr %s144, 64
          %s146 = scalar_lea.vmem [#allocation2], %s145
          %s147 = smul.u32 4, %s18
          %s149 = ssub.s32 1024, 1024
          %150 = vsyncadd %s143, %s149
          %s151 = smul.addr %s147, 64
          %s152 = scalar_lea.hbm %s0, %s151
          %s153 = sshll.u32 %s146, 4
          %s154 = int_to_ptr.vmem [resolvable:$true] %s153
          %159 = dma.hbm_to_vmem [thread:$0]  %s152, 1024, %s154, %s143, 512, 256, 16
        $region24: #{tpu_custom_call.1} parent=19 // pred_fallthru
          _
        // Predicated region
        $region25: #{tpu_custom_call.1} parent=19 // pred_check
          %p160 = pneg %p64
        $region26: #{tpu_custom_call.1} parent=19 // pred_check_branch
          %162 = sbr.rel (%p160) target = $region28
        $region27: #{tpu_custom_call.1} parent=19 // pred_region
          %s163 = sand.u32 %s54, 1
          %s164 = scalar_lea.sflag [#allocation6], %s163
          %s165 = sand.u32 %s54, 1
          %s166 = smul.addr %s165, 64
          %s167 = scalar_lea.vmem [#allocation5], %s166
          %s168 = smul.u32 4, %s18
          %s170 = ssub.s32 1024, 1024
          %171 = vsyncadd %s164, %s170
          %s172 = smul.addr %s168, 64
          %s173 = scalar_lea.hbm %s1, %s172
          %s174 = sshll.u32 %s167, 4
          %s175 = int_to_ptr.vmem [resolvable:$true] %s174
          %180 = dma.hbm_to_vmem [thread:$0]  %s173, 1024, %s175, %s164, 512, 256, 16
        $region28: #{tpu_custom_call.1} parent=19 // pred_fallthru
          _
      $region20: #{tpu_custom_call.1} parent=5 // pred_fallthru
        _
      %p181 = scmp.le.s32.totalorder 1, %s18
      %p182 = scmp.lt.s32.totalorder %s18, 3
      %p183 = pnand %p181, %p182
      %p184 = pneg %p183
      // Predicated region
      $region29: #{tpu_custom_call.1} parent=5 // pred_check
        _
      $region30: #{tpu_custom_call.1} parent=5 // pred_check_branch
        %186 = sbr.rel (%p183) target = $region32
      $region31: #{tpu_custom_call.1} parent=5 // pred_region
        %s187 = ssub.s32 %s18, 1
        %s188 = sand.u32 %s31, 1
        %s189 = scalar_lea.sflag [#allocation3], %s188
        %s190 = sand.u32 %s31, 1
        %s191 = smul.addr %s190, 64
        %s192 = scalar_lea.vmem [#allocation2], %s191
        // Predicated region
        $region33: #{tpu_custom_call.1} parent=31 // pred_check
          %p193 = pneg %p44
        $region34: #{tpu_custom_call.1} parent=31 // pred_check_branch
          %195 = sbr.rel (%p193) target = $region36
        $region35: #{tpu_custom_call.1} parent=31 // pred_region
          %196 = dma.done %s189, 1024
        $region36: #{tpu_custom_call.1} parent=31 // pred_fallthru
          _
        %s197 = sand.u32 %s57, 1
        %s198 = scalar_lea.sflag [#allocation6], %s197
        %s199 = sand.u32 %s57, 1
        %s200 = smul.addr %s199, 64
        %s201 = scalar_lea.vmem [#allocation5], %s200
        // Predicated region
        $region37: #{tpu_custom_call.1} parent=31 // pred_check
          %p202 = pneg %p70
        $region38: #{tpu_custom_call.1} parent=31 // pred_check_branch
          %204 = sbr.rel (%p202) target = $region40
        $region39: #{tpu_custom_call.1} parent=31 // pred_region
          %205 = dma.done %s198, 1024
        $region40: #{tpu_custom_call.1} parent=31 // pred_fallthru
          _
        %s206 = sand.u32 %s31, 1
        %s207 = scalar_lea.sflag [#allocation3], %s206
        %s208 = sand.u32 %s31, 1
        %s209 = smul.addr %s208, 64
        %s210 = scalar_lea.vmem [#allocation2], %s209
        %p211 = pneg %p44
        %p212 = pneg %p41
        %s213 = sand.u32 %s57, 1
        %s214 = scalar_lea.sflag [#allocation6], %s213
        %s215 = sand.u32 %s57, 1
        %s216 = smul.addr %s215, 64
        %s217 = scalar_lea.vmem [#allocation5], %s216
        %p218 = pneg %p70
        %p219 = pneg %p67
        %p220 = pneg %p91
        %p221 = pneg %p88
        %p222 = pneg %p117
        %p223 = pneg %p114
        %s224 = sand.u32 %s104, 1
        %s225 = scalar_lea.sflag [#allocation4], %s224
        %s226 = sand.u32 %s104, 1
        %s227 = smul.addr %s226, 4
        %s228 = scalar_lea.vmem [#allocation7], %s227
        %s229 = smul.u32 4, %s23
        %s230 = smul.u32 4, %s23
        %s231 = smul.u32 4, %s23
        %v233 = vld [vmem:[%s192] sm:$0xff]
        %v234 = vld [vmem:[%s192 + $0x8] sm:$0xff]
        %v235 = vld [vmem:[%s192 + $0x10] sm:$0xff]
        %v236 = vld [vmem:[%s192 + $0x18] sm:$0xff]
        %v237 = vld [vmem:[%s192 + $0x20] sm:$0xff]
        %v238 = vld [vmem:[%s192 + $0x28] sm:$0xff]
        %v239 = vld [vmem:[%s192 + $0x30] sm:$0xff]
        %v240 = vld [vmem:[%s192 + $0x38] sm:$0xff]
        %v241 = vld [vmem:[%s2] sm:$0xf]
        %v242 = vld [vmem:[%s2 + $0x4] sm:$0xf]
        %v243 = vld [vmem:[%s2 + $0x8] sm:$0xf]
        %v244 = vld [vmem:[%s2 + $0xc] sm:$0xf]
        %v245 = vld [vmem:[%s2 + $0x10] sm:$0xf]
        %v246 = vld [vmem:[%s2 + $0x14] sm:$0xf]
        %v247 = vld [vmem:[%s2 + $0x18] sm:$0xf]
        %v248 = vld [vmem:[%s2 + $0x1c] sm:$0xf]
        %v249 = vld [vmem:[%s2 + $0x20] sm:$0xf]
        %v250 = vld [vmem:[%s2 + $0x24] sm:$0xf]
        %v251 = vld [vmem:[%s2 + $0x28] sm:$0xf]
        %v252 = vld [vmem:[%s2 + $0x2c] sm:$0xf]
        %v253 = vld [vmem:[%s2 + $0x30] sm:$0xf]
        %v254 = vld [vmem:[%s2 + $0x34] sm:$0xf]
        %v255 = vld [vmem:[%s2 + $0x38] sm:$0xf]
        %v256 = vld [vmem:[%s2 + $0x3c] sm:$0xf]
        %v257 = vld [vmem:[%s2 + $0x40] sm:$0xf]
        %v258 = vld [vmem:[%s2 + $0x44] sm:$0xf]
        %v259 = vld [vmem:[%s2 + $0x48] sm:$0xf]
        %v260 = vld [vmem:[%s2 + $0x4c] sm:$0xf]
        %v281 = vunpack.c.l.b16 %v241
        %v282 = vunpack.c.l.b16 %v242
        %v283 = vunpack.c.l.b16 %v243
        %v284 = vunpack.c.l.b16 %v244
        %v285 = vunpack.c.l.b16 %v245
        %v286 = vunpack.c.l.b16 %v246
        %v287 = vunpack.c.l.b16 %v247
        %v288 = vunpack.c.l.b16 %v248
        %v289 = vunpack.c.l.b16 %v249
        %v290 = vunpack.c.l.b16 %v250
        %v291 = vunpack.c.l.b16 %v251
        %v292 = vunpack.c.l.b16 %v252
        %v293 = vunpack.c.l.b16 %v253
        %v294 = vunpack.c.l.b16 %v254
        %v295 = vunpack.c.l.b16 %v255
        %v296 = vunpack.c.l.b16 %v256
        %v297 = vunpack.c.l.b16 %v257
        %v298 = vunpack.c.l.b16 %v258
        %v299 = vunpack.c.l.b16 %v259
        %v300 = vunpack.c.l.b16 %v260
        %v301 = vpack.c.b16 %v282, %v281
        %v302 = vpack.c.b16 %v284, %v283
        %v303 = vpack.c.b16 %v286, %v285
        %v304 = vpack.c.b16 %v288, %v287
        %v305 = vpack.c.b16 %v290, %v289
        %v306 = vpack.c.b16 %v292, %v291
        %v307 = vpack.c.b16 %v294, %v293
        %v308 = vpack.c.b16 %v296, %v295
        %v309 = vpack.c.b16 %v298, %v297
        %v310 = vpack.c.b16 %v300, %v299
        %v319 = vunpack.c.l.b16 %v233
        %v320 = vunpack.c.h.b16 %v233
        %v321 = vunpack.c.l.b16 %v234
        %v322 = vunpack.c.h.b16 %v234
        %v323 = vunpack.c.l.b16 %v235
        %v324 = vunpack.c.h.b16 %v235
        %v325 = vunpack.c.l.b16 %v236
        %v326 = vunpack.c.h.b16 %v236
        %v327 = vunpack.c.l.b16 %v237
        %v328 = vunpack.c.h.b16 %v237
        %v329 = vunpack.c.l.b16 %v238
        %v330 = vunpack.c.h.b16 %v238
        %v331 = vunpack.c.l.b16 %v239
        %v332 = vunpack.c.h.b16 %v239
        %v333 = vunpack.c.l.b16 %v240
        %v334 = vunpack.c.h.b16 %v240
        %v335 = vpack.c.b16 %v323, %v319
        %v336 = vpack.c.b16 %v324, %v320
        %v337 = vpack.c.b16 %v325, %v321
        %v338 = vpack.c.b16 %v326, %v322
        %v339 = vpack.c.b16 %v331, %v327
        %v340 = vpack.c.b16 %v332, %v328
        %v341 = vpack.c.b16 %v333, %v329
        %v342 = vpack.c.b16 %v334, %v330
        %vm351 = vcmask 261120
        %v353 = vsel %vm351, %v301, 0
        %v356 = vsel %vm351, %v302, 0
        %v359 = vsel %vm351, %v303, 0
        %v362 = vsel %vm351, %v304, 0
        %v365 = vsel %vm351, %v305, 0
        %v368 = vsel %vm351, %v306, 0
        %v371 = vsel %vm351, %v307, 0
        %v374 = vsel %vm351, %v308, 0
        %v377 = vsel %vm351, %v309, 0
        %v380 = vsel %vm351, %v310, 0
        %382 = vmatprep.subr.bf16.mxu0 %v336
        %383 = vmatpush1.bf16.msra.mxu0 %v335
        %384 = vmatprep.subr.bf16.mxu0 %v340
        %385 = vmatpush1.bf16.msra.mxu0 %v339
        %386 = vmatprep.subr.bf16.mxu0 0
        %387 = vmatpush1.bf16.msra.mxu0 0
        %388 = vmatprep.subr.bf16.mxu0 0
        %389 = vmatpush1.bf16.msra.mxu0 0
        %390 = vmatprep.subr.bf16.mxu0 0
        %391 = vmatpush1.bf16.msra.mxu0 0
        %392 = vmatprep.subr.bf16.mxu0 0
        %393 = vmatpush1.bf16.msra.mxu0 0
        %394 = vmatprep.subr.bf16.mxu0 0
        %395 = vmatpush1.bf16.msra.mxu0 0
        %396 = vmatprep.subr.bf16.mxu0 0
        %397 = vmatpush1.bf16.msra.mxu0 0
        %398 = vmatprep.subr.bf16.mxu0 0
        %399 = vmatpush1.bf16.msra.mxu0 0
        %400 = vmatprep.subr.bf16.mxu0 0
        %401 = vmatpush1.bf16.msra.mxu0 0
        %402 = vmatprep.subr.bf16.mxu0 0
        %403 = vmatpush1.bf16.msra.mxu0 0
        %404 = vmatprep.subr.bf16.mxu0 0
        %405 = vmatpush1.bf16.msra.mxu0 0
        %406 = vmatprep.subr.bf16.mxu0 0
        %407 = vmatpush1.bf16.msra.mxu0 0
        %408 = vmatprep.subr.bf16.mxu0 0
        %409 = vmatpush1.bf16.msra.mxu0 0
        %410 = vmatprep.subr.bf16.mxu0 0
        %411 = vmatpush1.bf16.msra.mxu0 0
        %412 = vmatprep.subr.bf16.mxu0 0
        %413 = vmatpush1.bf16.msra.mxu0 0
        %414 = vmatprep.mubr.bf16.mxu0 0
        %415 = vmatmul.mubr.bf16.gmra.mrb[0].mxu0 %v353
        %v416 = vpop.f32.mrb[0].mxu0
        %v417 = vadd.f32 0.0, %v416
        %v418 = vpop.f32.mrb[0].mxu0
        %v419 = vadd.f32 0.0, %v418
        %v420 = vpop.f32.mrb[0].mxu0
        %v421 = vadd.f32 0.0, %v420
        %v422 = vpop.f32.mrb[0].mxu0
        %v423 = vadd.f32 0.0, %v422
        %424 = vmatprep.mubr.bf16.mxu0 0
        %425 = vmatmul.mubr.bf16.gmra.mrb[0].mxu0 %v356
        %v426 = vpop.f32.mrb[0].mxu0
        %v427 = vadd.f32 0.0, %v426
        %v428 = vpop.f32.mrb[0].mxu0
        %v429 = vadd.f32 0.0, %v428
        %v430 = vpop.f32.mrb[0].mxu0
        %v431 = vadd.f32 0.0, %v430
        %v432 = vpop.f32.mrb[0].mxu0
        %v433 = vadd.f32 0.0, %v432
        %434 = vmatprep.mubr.bf16.mxu0 0
        %435 = vmatmul.mubr.bf16.gmra.mrb[0].mxu0 %v359
        %v436 = vpop.f32.mrb[0].mxu0
        %v437 = vadd.f32 0.0, %v436
        %v438 = vpop.f32.mrb[0].mxu0
        %v439 = vadd.f32 0.0, %v438
        %v440 = vpop.f32.mrb[0].mxu0
        %v441 = vadd.f32 0.0, %v440
        %v442 = vpop.f32.mrb[0].mxu0
        %v443 = vadd.f32 0.0, %v442
        %444 = vmatprep.mubr.bf16.mxu0 0
        %445 = vmatmul.mubr.bf16.gmra.mrb[0].mxu0 %v362
        %v446 = vpop.f32.mrb[0].mxu0
        %v447 = vadd.f32 0.0, %v446
        %v448 = vpop.f32.mrb[0].mxu0
        %v449 = vadd.f32 0.0, %v448
        %v450 = vpop.f32.mrb[0].mxu0
        %v451 = vadd.f32 0.0, %v450
        %v452 = vpop.f32.mrb[0].mxu0
        %v453 = vadd.f32 0.0, %v452
        %454 = vmatprep.mubr.bf16.mxu0 0
        %455 = vmatmul.mubr.bf16.gmra.mrb[0].mxu0 %v365
        %v456 = vpop.f32.mrb[0].mxu0
        %v457 = vadd.f32 0.0, %v456
        %v458 = vpop.f32.mrb[0].mxu0
        %v459 = vadd.f32 0.0, %v458
        %v460 = vpop.f32.mrb[0].mxu0
        %v461 = vadd.f32 0.0, %v460
        %v462 = vpop.f32.mrb[0].mxu0
        %v463 = vadd.f32 0.0, %v462
        %464 = vmatprep.mubr.bf16.mxu0 0
        %465 = vmatmul.mubr.bf16.gmra.mrb[0].mxu0 %v368
        %v466 = vpop.f32.mrb[0].mxu0
        %v467 = vadd.f32 0.0, %v466
        %v468 = vpop.f32.mrb[0].mxu0
        %v469 = vadd.f32 0.0, %v468
        %v470 = vpop.f32.mrb[0].mxu0
        %v471 = vadd.f32 0.0, %v470
        %v472 = vpop.f32.mrb[0].mxu0
        %v473 = vadd.f32 0.0, %v472
        %474 = vmatprep.mubr.bf16.mxu0 0
        %475 = vmatmul.mubr.bf16.gmra.mrb[0].mxu0 %v371
        %v476 = vpop.f32.mrb[0].mxu0
        %v477 = vadd.f32 0.0, %v476
        %v478 = vpop.f32.mrb[0].mxu0
        %v479 = vadd.f32 0.0, %v478
        %v480 = vpop.f32.mrb[0].mxu0
        %v481 = vadd.f32 0.0, %v480
        %v482 = vpop.f32.mrb[0].mxu0
        %v483 = vadd.f32 0.0, %v482
        %484 = vmatprep.mubr.bf16.mxu0 0
        %485 = vmatmul.mubr.bf16.gmra.mrb[0].mxu0 %v374
        %v486 = vpop.f32.mrb[0].mxu0
        %v487 = vadd.f32 0.0, %v486
        %v488 = vpop.f32.mrb[0].mxu0
        %v489 = vadd.f32 0.0, %v488
        %v490 = vpop.f32.mrb[0].mxu0
        %v491 = vadd.f32 0.0, %v490
        %v492 = vpop.f32.mrb[0].mxu0
        %v493 = vadd.f32 0.0, %v492
        %494 = vmatprep.mubr.bf16.mxu0 0
        %495 = vmatmul.mubr.bf16.gmra.mrb[0].mxu0 %v377
        %v496 = vpop.f32.mrb[0].mxu0
        %v497 = vadd.f32 0.0, %v496
        %v498 = vpop.f32.mrb[0].mxu0
        %v499 = vadd.f32 0.0, %v498
        %v500 = vpop.f32.mrb[0].mxu0
        %v501 = vadd.f32 0.0, %v500
        %v502 = vpop.f32.mrb[0].mxu0
        %v503 = vadd.f32 0.0, %v502
        %504 = vmatprep.mubr.bf16.mxu0 0
        %505 = vmatmul.mubr.bf16.gmra.mrb[0].mxu0 %v380
        %v506 = vpop.f32.mrb[0].mxu0
        %v507 = vadd.f32 0.0, %v506
        %v508 = vpop.f32.mrb[0].mxu0
        %v509 = vadd.f32 0.0, %v508
        %v510 = vpop.f32.mrb[0].mxu0
        %v511 = vadd.f32 0.0, %v510
        %v512 = vpop.f32.mrb[0].mxu0
        %v513 = vadd.f32 0.0, %v512
        %514 = vdwg.mxu0
        %515 = vmatprep.subr.bf16.mxu0 %v338
        %516 = vmatpush1.bf16.msra.mxu0 %v337
        %517 = vmatprep.subr.bf16.mxu0 %v342
        %518 = vmatpush1.bf16.msra.mxu0 %v341
        %519 = vmatprep.subr.bf16.mxu0 0
        %520 = vmatpush1.bf16.msra.mxu0 0
        %521 = vmatprep.subr.bf16.mxu0 0
        %522 = vmatpush1.bf16.msra.mxu0 0
        %523 = vmatprep.subr.bf16.mxu0 0
        %524 = vmatpush1.bf16.msra.mxu0 0
        %525 = vmatprep.subr.bf16.mxu0 0
        %526 = vmatpush1.bf16.msra.mxu0 0
        %527 = vmatprep.subr.bf16.mxu0 0
        %528 = vmatpush1.bf16.msra.mxu0 0
        %529 = vmatprep.subr.bf16.mxu0 0
        %530 = vmatpush1.bf16.msra.mxu0 0
        %531 = vmatprep.subr.bf16.mxu0 0
        %532 = vmatpush1.bf16.msra.mxu0 0
        %533 = vmatprep.subr.bf16.mxu0 0
        %534 = vmatpush1.bf16.msra.mxu0 0
        %535 = vmatprep.subr.bf16.mxu0 0
        %536 = vmatpush1.bf16.msra.mxu0 0
        %537 = vmatprep.subr.bf16.mxu0 0
        %538 = vmatpush1.bf16.msra.mxu0 0
        %539 = vmatprep.subr.bf16.mxu0 0
        %540 = vmatpush1.bf16.msra.mxu0 0
        %541 = vmatprep.subr.bf16.mxu0 0
        %542 = vmatpush1.bf16.msra.mxu0 0
        %543 = vmatprep.subr.bf16.mxu0 0
        %544 = vmatpush1.bf16.msra.mxu0 0
        %545 = vmatprep.subr.bf16.mxu0 0
        %546 = vmatpush1.bf16.msra.mxu0 0
        %547 = vmatprep.mubr.bf16.mxu0 0
        %548 = vmatmul.mubr.bf16.gmra.mrb[0].mxu0 %v353
        %v549 = vpop.f32.mrb[0].mxu0
        %v550 = vadd.f32 0.0, %v549
        %v551 = vpop.f32.mrb[0].mxu0
        %v552 = vadd.f32 0.0, %v551
        %v553 = vpop.f32.mrb[0].mxu0
        %v554 = vadd.f32 0.0, %v553
        %v555 = vpop.f32.mrb[0].mxu0
        %v556 = vadd.f32 0.0, %v555
        %557 = vmatprep.mubr.bf16.mxu0 0
        %558 = vmatmul.mubr.bf16.gmra.mrb[0].mxu0 %v356
        %v559 = vpop.f32.mrb[0].mxu0
        %v560 = vadd.f32 0.0, %v559
        %v561 = vpop.f32.mrb[0].mxu0
        %v562 = vadd.f32 0.0, %v561
        %v563 = vpop.f32.mrb[0].mxu0
        %v564 = vadd.f32 0.0, %v563
        %v565 = vpop.f32.mrb[0].mxu0
        %v566 = vadd.f32 0.0, %v565
        %567 = vmatprep.mubr.bf16.mxu0 0
        %568 = vmatmul.mubr.bf16.gmra.mrb[0].mxu0 %v359
        %v569 = vpop.f32.mrb[0].mxu0
        %v570 = vadd.f32 0.0, %v569
        %v571 = vpop.f32.mrb[0].mxu0
        %v572 = vadd.f32 0.0, %v571
        %v573 = vpop.f32.mrb[0].mxu0
        %v574 = vadd.f32 0.0, %v573
        %v575 = vpop.f32.mrb[0].mxu0
        %v576 = vadd.f32 0.0, %v575
        %577 = vmatprep.mubr.bf16.mxu0 0
        %578 = vmatmul.mubr.bf16.gmra.mrb[0].mxu0 %v362
        %v579 = vpop.f32.mrb[0].mxu0
        %v580 = vadd.f32 0.0, %v579
        %v581 = vpop.f32.mrb[0].mxu0
        %v582 = vadd.f32 0.0, %v581
        %v583 = vpop.f32.mrb[0].mxu0
        %v584 = vadd.f32 0.0, %v583
        %v585 = vpop.f32.mrb[0].mxu0
        %v586 = vadd.f32 0.0, %v585
        %587 = vmatprep.mubr.bf16.mxu0 0
        %588 = vmatmul.mubr.bf16.gmra.mrb[0].mxu0 %v365
        %v589 = vpop.f32.mrb[0].mxu0
        %v590 = vadd.f32 0.0, %v589
        %v591 = vpop.f32.mrb[0].mxu0
        %v592 = vadd.f32 0.0, %v591
        %v593 = vpop.f32.mrb[0].mxu0
        %v594 = vadd.f32 0.0, %v593
        %v595 = vpop.f32.mrb[0].mxu0
        %v596 = vadd.f32 0.0, %v595
        %597 = vmatprep.mubr.bf16.mxu0 0
        %598 = vmatmul.mubr.bf16.gmra.mrb[0].mxu0 %v368
        %v599 = vpop.f32.mrb[0].mxu0
        %v600 = vadd.f32 0.0, %v599
        %v601 = vpop.f32.mrb[0].mxu0
        %v602 = vadd.f32 0.0, %v601
        %v603 = vpop.f32.mrb[0].mxu0
        %v604 = vadd.f32 0.0, %v603
        %v605 = vpop.f32.mrb[0].mxu0
        %v606 = vadd.f32 0.0, %v605
        %607 = vmatprep.mubr.bf16.mxu0 0
        %608 = vmatmul.mubr.bf16.gmra.mrb[0].mxu0 %v371
        %v609 = vpop.f32.mrb[0].mxu0
        %v610 = vadd.f32 0.0, %v609
        %v611 = vpop.f32.mrb[0].mxu0
        %v612 = vadd.f32 0.0, %v611
        %v613 = vpop.f32.mrb[0].mxu0
        %v614 = vadd.f32 0.0, %v613
        %v615 = vpop.f32.mrb[0].mxu0
        %v616 = vadd.f32 0.0, %v615
        %617 = vmatprep.mubr.bf16.mxu0 0
        %618 = vmatmul.mubr.bf16.gmra.mrb[0].mxu0 %v374
        %v619 = vpop.f32.mrb[0].mxu0
        %v620 = vadd.f32 0.0, %v619
        %v621 = vpop.f32.mrb[0].mxu0
        %v622 = vadd.f32 0.0, %v621
        %v623 = vpop.f32.mrb[0].mxu0
        %v624 = vadd.f32 0.0, %v623
        %v625 = vpop.f32.mrb[0].mxu0
        %v626 = vadd.f32 0.0, %v625
        %627 = vmatprep.mubr.bf16.mxu0 0
        %628 = vmatmul.mubr.bf16.gmra.mrb[0].mxu0 %v377
        %v629 = vpop.f32.mrb[0].mxu0
        %v630 = vadd.f32 0.0, %v629
        %v631 = vpop.f32.mrb[0].mxu0
        %v632 = vadd.f32 0.0, %v631
        %v633 = vpop.f32.mrb[0].mxu0
        %v634 = vadd.f32 0.0, %v633
        %v635 = vpop.f32.mrb[0].mxu0
        %v636 = vadd.f32 0.0, %v635
        %637 = vmatprep.mubr.bf16.mxu0 0
        %638 = vmatmul.mubr.bf16.gmra.mrb[0].mxu0 %v380
        %v639 = vpop.f32.mrb[0].mxu0
        %v640 = vadd.f32 0.0, %v639
        %v641 = vpop.f32.mrb[0].mxu0
        %v642 = vadd.f32 0.0, %v641
        %v643 = vpop.f32.mrb[0].mxu0
        %v644 = vadd.f32 0.0, %v643
        %v645 = vpop.f32.mrb[0].mxu0
        %v646 = vadd.f32 0.0, %v645
        %647 = vdwg.mxu0
        %v648 = vld [vmem:[%s201] sm:$0xff]
        %v649 = vld [vmem:[%s201 + $0x8] sm:$0xff]
        %v650 = vld [vmem:[%s201 + $0x10] sm:$0xff]
        %v651 = vld [vmem:[%s201 + $0x18] sm:$0xff]
        %v652 = vld [vmem:[%s201 + $0x20] sm:$0xff]
        %v653 = vld [vmem:[%s201 + $0x28] sm:$0xff]
        %v654 = vld [vmem:[%s201 + $0x30] sm:$0xff]
        %v655 = vld [vmem:[%s201 + $0x38] sm:$0xff]
        %v656 = vunpack.c.l.bf16 %v648
        %v657 = vunpack.c.h.bf16 %v648
        %v658 = vunpack.c.l.bf16 %v649
        %v659 = vunpack.c.h.bf16 %v649
        %v660 = vunpack.c.l.bf16 %v650
        %v661 = vunpack.c.h.bf16 %v650
        %v662 = vunpack.c.l.bf16 %v651
        %v663 = vunpack.c.h.bf16 %v651
        %v664 = vunpack.c.l.bf16 %v652
        %v665 = vunpack.c.h.bf16 %v652
        %v666 = vunpack.c.l.bf16 %v653
        %v667 = vunpack.c.h.bf16 %v653
        %v668 = vunpack.c.l.bf16 %v654
        %v669 = vunpack.c.h.bf16 %v654
        %v670 = vunpack.c.l.bf16 %v655
        %v671 = vunpack.c.h.bf16 %v655
        %v672 = vmul.f32 %v417, %v656
        %v673 = vmul.f32 %v419, %v657
        %v674 = vmul.f32 %v550, %v658
        %v675 = vmul.f32 %v552, %v659
        %v676 = vmul.f32 %v421, %v660
        %v677 = vmul.f32 %v423, %v661
        %v678 = vmul.f32 %v554, %v662
        %v679 = vmul.f32 %v556, %v663
        %v680 = vmul.f32 %v427, %v664
        %v681 = vmul.f32 %v429, %v665
        %v682 = vmul.f32 %v560, %v666
        %v683 = vmul.f32 %v562, %v667
        %v684 = vmul.f32 %v431, %v668
        %v685 = vmul.f32 %v433, %v669
        %v686 = vmul.f32 %v564, %v670
        %v687 = vmul.f32 %v566, %v671
        %v688 = vmul.f32 %v437, %v656
        %v689 = vmul.f32 %v439, %v657
        %v690 = vmul.f32 %v570, %v658
        %v691 = vmul.f32 %v572, %v659
        %v692 = vmul.f32 %v441, %v660
        %v693 = vmul.f32 %v443, %v661
        %v694 = vmul.f32 %v574, %v662
        %v695 = vmul.f32 %v576, %v663
        %v696 = vmul.f32 %v447, %v664
        %v697 = vmul.f32 %v449, %v665
        %v698 = vmul.f32 %v580, %v666
        %v699 = vmul.f32 %v582, %v667
        %v700 = vmul.f32 %v451, %v668
        %v701 = vmul.f32 %v453, %v669
        %v702 = vmul.f32 %v584, %v670
        %v703 = vmul.f32 %v586, %v671
        %v704 = vmul.f32 %v457, %v656
        %v705 = vmul.f32 %v459, %v657
        %v706 = vmul.f32 %v590, %v658
        %v707 = vmul.f32 %v592, %v659
        %v708 = vmul.f32 %v461, %v660
        %v709 = vmul.f32 %v463, %v661
        %v710 = vmul.f32 %v594, %v662
        %v711 = vmul.f32 %v596, %v663
        %v712 = vmul.f32 %v467, %v664
        %v713 = vmul.f32 %v469, %v665
        %v714 = vmul.f32 %v600, %v666
        %v715 = vmul.f32 %v602, %v667
        %v716 = vmul.f32 %v471, %v668
        %v717 = vmul.f32 %v473, %v669
        %v718 = vmul.f32 %v604, %v670
        %v719 = vmul.f32 %v606, %v671
        %v720 = vmul.f32 %v477, %v656
        %v721 = vmul.f32 %v479, %v657
        %v722 = vmul.f32 %v610, %v658
        %v723 = vmul.f32 %v612, %v659
        %v724 = vmul.f32 %v481, %v660
        %v725 = vmul.f32 %v483, %v661
        %v726 = vmul.f32 %v614, %v662
        %v727 = vmul.f32 %v616, %v663
        %v728 = vmul.f32 %v487, %v664
        %v729 = vmul.f32 %v489, %v665
        %v730 = vmul.f32 %v620, %v666
        %v731 = vmul.f32 %v622, %v667
        %v732 = vmul.f32 %v491, %v668
        %v733 = vmul.f32 %v493, %v669
        %v734 = vmul.f32 %v624, %v670
        %v735 = vmul.f32 %v626, %v671
        %v736 = vmul.f32 %v497, %v656
        %v737 = vmul.f32 %v499, %v657
        %v738 = vmul.f32 %v630, %v658
        %v739 = vmul.f32 %v632, %v659
        %v740 = vmul.f32 %v501, %v660
        %v741 = vmul.f32 %v503, %v661
        %v742 = vmul.f32 %v634, %v662
        %v743 = vmul.f32 %v636, %v663
        %v744 = vmul.f32 %v507, %v664
        %v745 = vmul.f32 %v509, %v665
        %v746 = vmul.f32 %v640, %v666
        %v747 = vmul.f32 %v642, %v667
        %v748 = vmul.f32 %v511, %v668
        %v749 = vmul.f32 %v513, %v669
        %v750 = vmul.f32 %v644, %v670
        %v751 = vmul.f32 %v646, %v671
        %v752 = vadd.f32 %v672, %v676
        %v753 = vadd.f32 %v752, %v680
        %v754 = vadd.f32 %v753, %v684
        %v755 = vrot.slane %v754, 4
        %v756 = vadd.f32 %v754, %v755
        %v757 = vrot.slane %v756, 2
        %v758 = vadd.f32 %v756, %v757
        %v759 = vrot.slane %v758, 1
        %v760 = vadd.f32 %v758, %v759
        %v761 = vadd.f32 %v673, %v677
        %v762 = vadd.f32 %v761, %v681
        %v763 = vadd.f32 %v762, %v685
        %v764 = vrot.slane %v763, 4
        %v765 = vadd.f32 %v763, %v764
        %v766 = vrot.slane %v765, 2
        %v767 = vadd.f32 %v765, %v766
        %v768 = vrot.slane %v767, 1
        %v769 = vadd.f32 %v767, %v768
        %v770 = vadd.f32 %v674, %v678
        %v771 = vadd.f32 %v770, %v682
        %v772 = vadd.f32 %v771, %v686
        %v773 = vrot.slane %v772, 4
        %v774 = vadd.f32 %v772, %v773
        %v775 = vrot.slane %v774, 2
        %v776 = vadd.f32 %v774, %v775
        %v777 = vrot.slane %v776, 1
        %v778 = vadd.f32 %v776, %v777
        %v779 = vadd.f32 %v675, %v679
        %v780 = vadd.f32 %v779, %v683
        %v781 = vadd.f32 %v780, %v687
        %v782 = vrot.slane %v781, 4
        %v783 = vadd.f32 %v781, %v782
        %v784 = vrot.slane %v783, 2
        %v785 = vadd.f32 %v783, %v784
        %v786 = vrot.slane %v785, 1
        %v787 = vadd.f32 %v785, %v786
        %v788 = vadd.f32 %v688, %v692
        %v789 = vadd.f32 %v788, %v696
        %v790 = vadd.f32 %v789, %v700
        %v791 = vrot.slane %v790, 4
        %v792 = vadd.f32 %v790, %v791
        %v793 = vrot.slane %v792, 2
        %v794 = vadd.f32 %v792, %v793
        %v795 = vrot.slane %v794, 1
        %v796 = vadd.f32 %v794, %v795
        %v797 = vadd.f32 %v689, %v693
        %v798 = vadd.f32 %v797, %v697
        %v799 = vadd.f32 %v798, %v701
        %v800 = vrot.slane %v799, 4
        %v801 = vadd.f32 %v799, %v800
        %v802 = vrot.slane %v801, 2
        %v803 = vadd.f32 %v801, %v802
        %v804 = vrot.slane %v803, 1
        %v805 = vadd.f32 %v803, %v804
        %v806 = vadd.f32 %v690, %v694
        %v807 = vadd.f32 %v806, %v698
        %v808 = vadd.f32 %v807, %v702
        %v809 = vrot.slane %v808, 4
        %v810 = vadd.f32 %v808, %v809
        %v811 = vrot.slane %v810, 2
        %v812 = vadd.f32 %v810, %v811
        %v813 = vrot.slane %v812, 1
        %v814 = vadd.f32 %v812, %v813
        %v815 = vadd.f32 %v691, %v695
        %v816 = vadd.f32 %v815, %v699
        %v817 = vadd.f32 %v816, %v703
        %v818 = vrot.slane %v817, 4
        %v819 = vadd.f32 %v817, %v818
        %v820 = vrot.slane %v819, 2
        %v821 = vadd.f32 %v819, %v820
        %v822 = vrot.slane %v821, 1
        %v823 = vadd.f32 %v821, %v822
        %v824 = vadd.f32 %v704, %v708
        %v825 = vadd.f32 %v824, %v712
        %v826 = vadd.f32 %v825, %v716
        %v827 = vrot.slane %v826, 4
        %v828 = vadd.f32 %v826, %v827
        %v829 = vrot.slane %v828, 2
        %v830 = vadd.f32 %v828, %v829
        %v831 = vrot.slane %v830, 1
        %v832 = vadd.f32 %v830, %v831
        %v833 = vadd.f32 %v705, %v709
        %v834 = vadd.f32 %v833, %v713
        %v835 = vadd.f32 %v834, %v717
        %v836 = vrot.slane %v835, 4
        %v837 = vadd.f32 %v835, %v836
        %v838 = vrot.slane %v837, 2
        %v839 = vadd.f32 %v837, %v838
        %v840 = vrot.slane %v839, 1
        %v841 = vadd.f32 %v839, %v840
        %v842 = vadd.f32 %v706, %v710
        %v843 = vadd.f32 %v842, %v714
        %v844 = vadd.f32 %v843, %v718
        %v845 = vrot.slane %v844, 4
        %v846 = vadd.f32 %v844, %v845
        %v847 = vrot.slane %v846, 2
        %v848 = vadd.f32 %v846, %v847
        %v849 = vrot.slane %v848, 1
        %v850 = vadd.f32 %v848, %v849
        %v851 = vadd.f32 %v707, %v711
        %v852 = vadd.f32 %v851, %v715
        %v853 = vadd.f32 %v852, %v719
        %v854 = vrot.slane %v853, 4
        %v855 = vadd.f32 %v853, %v854
        %v856 = vrot.slane %v855, 2
        %v857 = vadd.f32 %v855, %v856
        %v858 = vrot.slane %v857, 1
        %v859 = vadd.f32 %v857, %v858
        %v860 = vadd.f32 %v720, %v724
        %v861 = vadd.f32 %v860, %v728
        %v862 = vadd.f32 %v861, %v732
        %v863 = vrot.slane %v862, 4
        %v864 = vadd.f32 %v862, %v863
        %v865 = vrot.slane %v864, 2
        %v866 = vadd.f32 %v864, %v865
        %v867 = vrot.slane %v866, 1
        %v868 = vadd.f32 %v866, %v867
        %v869 = vadd.f32 %v721, %v725
        %v870 = vadd.f32 %v869, %v729
        %v871 = vadd.f32 %v870, %v733
        %v872 = vrot.slane %v871, 4
        %v873 = vadd.f32 %v871, %v872
        %v874 = vrot.slane %v873, 2
        %v875 = vadd.f32 %v873, %v874
        %v876 = vrot.slane %v875, 1
        %v877 = vadd.f32 %v875, %v876
        %v878 = vadd.f32 %v722, %v726
        %v879 = vadd.f32 %v878, %v730
        %v880 = vadd.f32 %v879, %v734
        %v881 = vrot.slane %v880, 4
        %v882 = vadd.f32 %v880, %v881
        %v883 = vrot.slane %v882, 2
        %v884 = vadd.f32 %v882, %v883
        %v885 = vrot.slane %v884, 1
        %v886 = vadd.f32 %v884, %v885
        %v887 = vadd.f32 %v723, %v727
        %v888 = vadd.f32 %v887, %v731
        %v889 = vadd.f32 %v888, %v735
        %v890 = vrot.slane %v889, 4
        %v891 = vadd.f32 %v889, %v890
        %v892 = vrot.slane %v891, 2
        %v893 = vadd.f32 %v891, %v892
        %v894 = vrot.slane %v893, 1
        %v895 = vadd.f32 %v893, %v894
        %v896 = vadd.f32 %v736, %v740
        %v897 = vadd.f32 %v896, %v744
        %v898 = vadd.f32 %v897, %v748
        %v899 = vrot.slane %v898, 4
        %v900 = vadd.f32 %v898, %v899
        %v901 = vrot.slane %v900, 2
        %v902 = vadd.f32 %v900, %v901
        %v903 = vrot.slane %v902, 1
        %v904 = vadd.f32 %v902, %v903
        %v905 = vadd.f32 %v737, %v741
        %v906 = vadd.f32 %v905, %v745
        %v907 = vadd.f32 %v906, %v749
        %v908 = vrot.slane %v907, 4
        %v909 = vadd.f32 %v907, %v908
        %v910 = vrot.slane %v909, 2
        %v911 = vadd.f32 %v909, %v910
        %v912 = vrot.slane %v911, 1
        %v913 = vadd.f32 %v911, %v912
        %v914 = vadd.f32 %v738, %v742
        %v915 = vadd.f32 %v914, %v746
        %v916 = vadd.f32 %v915, %v750
        %v917 = vrot.slane %v916, 4
        %v918 = vadd.f32 %v916, %v917
        %v919 = vrot.slane %v918, 2
        %v920 = vadd.f32 %v918, %v919
        %v921 = vrot.slane %v920, 1
        %v922 = vadd.f32 %v920, %v921
        %v923 = vadd.f32 %v739, %v743
        %v924 = vadd.f32 %v923, %v747
        %v925 = vadd.f32 %v924, %v751
        %v926 = vrot.slane %v925, 4
        %v927 = vadd.f32 %v925, %v926
        %v928 = vrot.slane %v927, 2
        %v929 = vadd.f32 %v927, %v928
        %v930 = vrot.slane %v929, 1
        %v931 = vadd.f32 %v929, %v930
        %v932 = vmax.f32 %v760, %v796
        %v933 = vmax.f32 %v932, %v832
        %v934 = vmax.f32 %v933, %v868
        %v935 = vmax.f32 %v934, %v904
        %v936 = vmax.f32 %v769, %v805
        %v937 = vmax.f32 %v936, %v841
        %v938 = vmax.f32 %v937, %v877
        %v939 = vmax.f32 %v938, %v913
        %v940 = vmax.f32 %v778, %v814
        %v941 = vmax.f32 %v940, %v850
        %v942 = vmax.f32 %v941, %v886
        %v943 = vmax.f32 %v942, %v922
        %v944 = vmax.f32 %v787, %v823
        %v945 = vmax.f32 %v944, %v859
        %v946 = vmax.f32 %v945, %v895
        %v947 = vmax.f32 %v946, %v931
        %v948 = vsub.f32 %v760, %v935
        %v949 = vsub.f32 %v769, %v939
        %v950 = vsub.f32 %v778, %v943
        %v951 = vsub.f32 %v787, %v947
        %v952 = vsub.f32 %v796, %v935
        %v953 = vsub.f32 %v805, %v939
        %v954 = vsub.f32 %v814, %v943
        %v955 = vsub.f32 %v823, %v947
        %v956 = vsub.f32 %v832, %v935
        %v957 = vsub.f32 %v841, %v939
        %v958 = vsub.f32 %v850, %v943
        %v959 = vsub.f32 %v859, %v947
        %v960 = vsub.f32 %v868, %v935
        %v961 = vsub.f32 %v877, %v939
        %v962 = vsub.f32 %v886, %v943
        %v963 = vsub.f32 %v895, %v947
        %v964 = vsub.f32 %v904, %v935
        %v965 = vsub.f32 %v913, %v939
        %v966 = vsub.f32 %v922, %v943
        %v967 = vsub.f32 %v931, %v947
        %v968 = vmul.f32 %v948, 1.442695
        %v969 = vpow.pop %v968
        %v970 = vmul.f32 %v949, 1.442695
        %v971 = vpow.pop %v970
        %v972 = vmul.f32 %v950, 1.442695
        %v973 = vpow.pop %v972
        %v974 = vmul.f32 %v951, 1.442695
        %v975 = vpow.pop %v974
        %v976 = vmul.f32 %v952, 1.442695
        %v977 = vpow.pop %v976
        %v978 = vmul.f32 %v953, 1.442695
        %v979 = vpow.pop %v978
        %v980 = vmul.f32 %v954, 1.442695
        %v981 = vpow.pop %v980
        %v982 = vmul.f32 %v955, 1.442695
        %v983 = vpow.pop %v982
        %v984 = vmul.f32 %v956, 1.442695
        %v985 = vpow.pop %v984
        %v986 = vmul.f32 %v957, 1.442695
        %v987 = vpow.pop %v986
        %v988 = vmul.f32 %v958, 1.442695
        %v989 = vpow.pop %v988
        %v990 = vmul.f32 %v959, 1.442695
        %v991 = vpow.pop %v990
        %v992 = vmul.f32 %v960, 1.442695
        %v993 = vpow.pop %v992
        %v994 = vmul.f32 %v961, 1.442695
        %v995 = vpow.pop %v994
        %v996 = vmul.f32 %v962, 1.442695
        %v997 = vpow.pop %v996
        %v998 = vmul.f32 %v963, 1.442695
        %v999 = vpow.pop %v998
        %v1000 = vmul.f32 %v964, 1.442695
        %v1001 = vpow.pop %v1000
        %v1002 = vmul.f32 %v965, 1.442695
        %v1003 = vpow.pop %v1002
        %v1004 = vmul.f32 %v966, 1.442695
        %v1005 = vpow.pop %v1004
        %v1006 = vmul.f32 %v967, 1.442695
        %v1007 = vpow.pop %v1006
        %v1028 = vrot.slane %v977, 7
        %vm1029 = vcmask 1041409
        %v1030 = vsel %vm1029, %v1028, %v969
        %v1031 = vrot.slane %v985, 6
        %vm1032 = vcmask 1042434
        %v1033 = vsel %vm1032, %v1031, %v1030
        %v1034 = vrot.slane %v993, 5
        %vm1035 = vcmask 1043459
        %v1036 = vsel %vm1035, %v1034, %v1033
        %v1037 = vrot.slane %v1001, 4
        %vm1038 = vcmask 1044484
        %v1039 = vsel %vm1038, %v1037, %v1036
        %v1040 = vrot.slane %v979, 7
        %v1041 = vsel %vm1029, %v1040, %v971
        %v1042 = vrot.slane %v987, 6
        %v1043 = vsel %vm1032, %v1042, %v1041
        %v1044 = vrot.slane %v995, 5
        %v1045 = vsel %vm1035, %v1044, %v1043
        %v1046 = vrot.slane %v1003, 4
        %v1047 = vsel %vm1038, %v1046, %v1045
        %v1048 = vrot.slane %v981, 7
        %v1049 = vsel %vm1029, %v1048, %v973
        %v1050 = vrot.slane %v989, 6
        %v1051 = vsel %vm1032, %v1050, %v1049
        %v1052 = vrot.slane %v997, 5
        %v1053 = vsel %vm1035, %v1052, %v1051
        %v1054 = vrot.slane %v1005, 4
        %v1055 = vsel %vm1038, %v1054, %v1053
        %v1056 = vrot.slane %v983, 7
        %v1057 = vsel %vm1029, %v1056, %v975
        %v1058 = vrot.slane %v991, 6
        %v1059 = vsel %vm1032, %v1058, %v1057
        %v1060 = vrot.slane %v999, 5
        %v1061 = vsel %vm1035, %v1060, %v1059
        %v1062 = vrot.slane %v1007, 4
        %v1063 = vsel %vm1038, %v1062, %v1061
        %vm1068 = vcmask 1044480
        %v1069 = vsel %vm1068, %v1039, 0.0
        %v1070 = vrot.slane %v1069, 4
        %v1071 = vadd.f32 %v1069, %v1070
        %v1072 = vrot.slane %v1071, 2
        %v1073 = vadd.f32 %v1071, %v1072
        %v1074 = vrot.slane %v1073, 1
        %v1075 = vadd.f32 %v1073, %v1074
        %v1076 = vsel %vm1068, %v1047, 0.0
        %v1077 = vrot.slane %v1076, 4
        %v1078 = vadd.f32 %v1076, %v1077
        %v1079 = vrot.slane %v1078, 2
        %v1080 = vadd.f32 %v1078, %v1079
        %v1081 = vrot.slane %v1080, 1
        %v1082 = vadd.f32 %v1080, %v1081
        %v1083 = vsel %vm1068, %v1055, 0.0
        %v1084 = vrot.slane %v1083, 4
        %v1085 = vadd.f32 %v1083, %v1084
        %v1086 = vrot.slane %v1085, 2
        %v1087 = vadd.f32 %v1085, %v1086
        %v1088 = vrot.slane %v1087, 1
        %v1089 = vadd.f32 %v1087, %v1088
        %v1090 = vsel %vm1068, %v1063, 0.0
        %v1091 = vrot.slane %v1090, 4
        %v1092 = vadd.f32 %v1090, %v1091
        %v1093 = vrot.slane %v1092, 2
        %v1094 = vadd.f32 %v1092, %v1093
        %v1095 = vrot.slane %v1094, 1
        %v1096 = vadd.f32 %v1094, %v1095
        %v1097 = vmul.f32 %v977, 2.0
        %v1098 = vmul.f32 %v979, 2.0
        %v1099 = vmul.f32 %v981, 2.0
        %v1100 = vmul.f32 %v983, 2.0
        %v1101 = vadd.f32 %v969, %v1097
        %v1102 = vadd.f32 %v971, %v1098
        %v1103 = vadd.f32 %v973, %v1099
        %v1104 = vadd.f32 %v975, %v1100
        %v1105 = vmul.f32 %v985, 3.0
        %v1106 = vmul.f32 %v987, 3.0
        %v1107 = vmul.f32 %v989, 3.0
        %v1108 = vmul.f32 %v991, 3.0
        %v1109 = vadd.f32 %v1101, %v1105
        %v1110 = vadd.f32 %v1102, %v1106
        %v1111 = vadd.f32 %v1103, %v1107
        %v1112 = vadd.f32 %v1104, %v1108
        %v1113 = vmul.f32 %v993, 4.0
        %v1114 = vmul.f32 %v995, 4.0
        %v1115 = vmul.f32 %v997, 4.0
        %v1116 = vmul.f32 %v999, 4.0
        %v1117 = vadd.f32 %v1109, %v1113
        %v1118 = vadd.f32 %v1110, %v1114
        %v1119 = vadd.f32 %v1111, %v1115
        %v1120 = vadd.f32 %v1112, %v1116
        %v1121 = vmul.f32 %v1001, 5.0
        %v1122 = vmul.f32 %v1003, 5.0
        %v1123 = vmul.f32 %v1005, 5.0
        %v1124 = vmul.f32 %v1007, 5.0
        %v1125 = vadd.f32 %v1117, %v1121
        %v1126 = vadd.f32 %v1118, %v1122
        %v1127 = vadd.f32 %v1119, %v1123
        %v1128 = vadd.f32 %v1120, %v1124
        %v1129 = vrcp.pop %v1075
        %v1130 = vrcp.pop %v1082
        %v1131 = vrcp.pop %v1089
        %v1132 = vrcp.pop %v1096
        %v1133 = vmul.f32 %v1125, %v1129
        %v1134 = vmul.f32 %v1126, %v1130
        %v1135 = vmul.f32 %v1127, %v1131
        %v1136 = vmul.f32 %v1128, %v1132
        %v1141 = vcombine.low %v1133, %v1134
        %v1142 = vcombine.low %v1135, %v1136
        %v1144 = vunpack.c.l.s4 1966171168
        %v1145 = vunpack.c.0.s8 %v1144
        %v1146 = vlaneseq
        %v1147 = vshrl.u32 %v1146, 7
        %v1148 = vsub.s32 %v1145, %v1147
        %v1149 = vrot.slane %v1141, %v1148
        %v1151 = vunpack.c.l.s4 1966171168
        %v1152 = vunpack.c.0.s8 %v1151
        %v1153 = vlaneseq
        %v1154 = vshrl.u32 %v1153, 7
        %v1155 = vsub.s32 %v1152, %v1154
        %v1156 = vrot.slane %v1142, %v1155
        %v1157 = vcombine.low %v1149, %v1156
        %v1159 = vunpack.c.l.s4 1966171168
        %v1160 = vunpack.c.0.s8 %v1159
        %v1161 = vlaneseq
        %v1162 = vshrl.u32 %v1161, 7
        %v1163 = vsub.s32 %v1160, %v1162
        %v1164 = vrot.slane %v1157, %v1163
        %v1166 = vlaneseq
        %vm1167 = vcmp.ge.s32.totalorder %v1166, 0
        %vm1168 = vcmp.lt.s32.totalorder %v1166, 512
        %vm1169 = vmand %vm1167, %vm1168
        %1170 = vst.msk [vmem:[%s228] sm:$0xf] %vm1169, %v1164
        %s1171 = sand.u32 %s104, 1
        %s1172 = scalar_lea.sflag [#allocation4], %s1171
        %s1173 = sand.u32 %s104, 1
        %s1174 = smul.addr %s1173, 4
        %s1175 = scalar_lea.vmem [#allocation7], %s1174
        // Predicated region
        $region41: #{tpu_custom_call.1} parent=31 // pred_check
          %p1176 = pneg %p114
        $region42: #{tpu_custom_call.1} parent=31 // pred_check_branch
          %1178 = sbr.rel (%p1176) target = $region44
        $region43: #{tpu_custom_call.1} parent=31 // pred_region
          %s1179 = smul.u32 4, %s23
          %s1181 = ssub.s32 64, 64
          %1182 = vsyncadd %s1172, %s1181
          %s1183 = smul.addr %s1179, 16
          %s1184 = scalar_lea.hbm %s3, %s1183
          %s1186 = sshll.u32 %s1175, 4
          %s1187 = int_to_ptr.vmem [resolvable:$true] %s1186
          %1189 = dma.vmem_to_hbm [thread:$0]  %s1187, 64, %s1184, %s1172
        $region44: #{tpu_custom_call.1} parent=31 // pred_fallthru
          _
      $region32: #{tpu_custom_call.1} parent=5 // pred_fallthru
        _
      %p1190 = scmp.le.s32.totalorder 2, %s18
      // Predicated region
      $region45: #{tpu_custom_call.1} parent=5 // pred_check
        %p1191 = pneg %p1190
      $region46: #{tpu_custom_call.1} parent=5 // pred_check_branch
        %1193 = sbr.rel (%p1191) target = $region48
      $region47: #{tpu_custom_call.1} parent=5 // pred_region
        %s1194 = ssub.s32 %s18, 2
        // Predicated region
        $region49: #{tpu_custom_call.1} parent=47 // pred_check
          %p1195 = pneg %p120
        $region50: #{tpu_custom_call.1} parent=47 // pred_check_branch
          %1197 = sbr.rel (%p1195) target = $region52
        $region51: #{tpu_custom_call.1} parent=47 // pred_region
          %s1198 = sand.u32 %s105, 1
          %s1199 = scalar_lea.sflag [#allocation4], %s1198
          %s1200 = sand.u32 %s105, 1
          %s1201 = smul.addr %s1200, 4
          %s1202 = scalar_lea.vmem [#allocation7], %s1201
          %1203 = dma.done %s1199, 64
        $region52: #{tpu_custom_call.1} parent=47 // pred_fallthru
          _
      $region48: #{tpu_custom_call.1} parent=5 // pred_fallthru
        _
    $region6: #{tpu_custom_call.1} parent=1 // loop_footer
      %s22 = sadd.s32 1, %s18
    $region7: #{tpu_custom_call.1} parent=1 // loop_footer_branch
      %17 = sbr.rel target = $region3
    $region8: #{tpu_custom_call.1} parent=1 // loop_exit
      _
    %1204 = vsyncpa [#allocation3], 1
    %s1205 = scalar_lea.sflag [#allocation3], 1
    %1206 = vsyncpa %s1205, 1
    %1207 = vsyncpa [#allocation6], 1
    %s1208 = scalar_lea.sflag [#allocation6], 1
    %1209 = vsyncpa %s1208, 1
    %1210 = vsyncpa [#allocation4], 1
    %s1211 = scalar_lea.sflag [#allocation4], 1
    %1212 = vsyncpa %s1211, 1

</llo_original>
